<compile_context>
chip_gen: v7x
topology: tpu7x:2x2x1
jax: 0.10.0
libtpu: 0.0.40
codegen_flags: <defaults>
</compile_context>

<pallas_src>
import math
from functools import partial

import jax
import jax.numpy as jnp
import numpy as np
from jax.experimental import pallas as pl
from jax.experimental.pallas import tpu as pltpu

# ---------------------------------------------------------------------------
# model dims (small, consistent with the module's forward)
# ---------------------------------------------------------------------------
B = 2          # batch
S = 8          # sequence length
D_MODEL = 32   # d_model
HEADS = 4
D_K = D_MODEL // HEADS
D_FF = 64      # FeedForward hidden size (tutorial default is 2048; scaled down)
LN_EPS = 1e-5  # torch.nn.LayerNorm default


# ---------------------------------------------------------------------------
# Pallas kernel: one full encoder layer for a block of `bt` batch elements,
# operating on flattened tokens (bt*S, D).
# ---------------------------------------------------------------------------
def encoder_layer_kernel(src_ref, mask_ref,
                         gamma_ref, beta_ref,
                         wqkv_ref, bqkv_ref,
                         wo_ref, bo_ref,
                         w1_ref, b1_ref, w2_ref, b2_ref,
                         out_ref, *, bt, seq, heads, d_k):
    d = heads * d_k
    src = src_ref[...]                      # (bt*S, D) float32 already
    gamma = gamma_ref[...]                  # (1, D)
    beta = beta_ref[...]                    # (1, D)

    def layernorm(x):
        mu = jnp.mean(x, axis=-1, keepdims=True)
        var = jnp.mean((x - mu) ** 2, axis=-1, keepdims=True)
        return (x - mu) * jax.lax.rsqrt(var + LN_EPS) * gamma + beta

    # ----- self attention sub-layer (pre-norm) -----
    x = layernorm(src)
    # fused Q/K/V projection: one MXU matmul instead of three
    qkv = jnp.dot(x, wqkv_ref[...], preferred_element_type=jnp.float32) + bqkv_ref[...]
    q = qkv[:, :d] * (1.0 / math.sqrt(d_k))   # fold 1/sqrt(d_k) into q once
    k = qkv[:, d:2 * d]
    v = qkv[:, 2 * d:]

    # additive mask bias, computed ONCE (1 = keep, 0 = mask -> -1e9)
    bias = jnp.where(mask_ref[...] == 0.0, -1e9, 0.0)     # (bt, 1, S)

    # scores for every (batch, head) stacked on the sublane axis: (bt*H*S, S)
    blocks = []
    for b in range(bt):                         # static (bt is compile-time)
        qb = q[b * seq:(b + 1) * seq]
        kb = k[b * seq:(b + 1) * seq]
        bias_b = bias[b]                        # (1, S)
        for h in range(heads):
            sc = jnp.dot(qb[:, h * d_k:(h + 1) * d_k],
                         kb[:, h * d_k:(h + 1) * d_k].T,
                         preferred_element_type=jnp.float32)
            blocks.append(sc + bias_b)
    scores = jnp.concatenate(blocks, axis=0)    # (bt*H*S, S)

    # one vectorized softmax pass over all heads/batches
    m = jnp.max(scores, axis=-1, keepdims=True)
    e = jnp.exp(scores - m)
    p = e * pl.reciprocal(jnp.sum(e, axis=-1, keepdims=True), approx=True)

    # context: per (batch, head) MXU matmul; heads concat on lanes, batch on sublanes
    ctx_rows = []
    for b in range(bt):
        vb = v[b * seq:(b + 1) * seq]
        heads_out = [
            jnp.dot(p[(b * heads + h) * seq:(b * heads + h + 1) * seq],
                    vb[:, h * d_k:(h + 1) * d_k],
                    preferred_element_type=jnp.float32)
            for h in range(heads)
        ]
        ctx_rows.append(jnp.concatenate(heads_out, axis=1))   # (S, D)
    ctx = jnp.concatenate(ctx_rows, axis=0)                    # (bt*S, D)

    attn_out = jnp.dot(ctx, wo_ref[...], preferred_element_type=jnp.float32) + bo_ref[...]
    src = src + attn_out                        # residual (dropout = identity)

    # ----- feed-forward sub-layer (same LayerNorm instance, per the spec) -----
    x = layernorm(src)
    h1 = jnp.maximum(
        jnp.dot(x, w1_ref[...], preferred_element_type=jnp.float32) + b1_ref[...], 0.0)
    ff = jnp.dot(h1, w2_ref[...], preferred_element_type=jnp.float32) + b2_ref[...]

    out_ref[...] = (src + ff).astype(out_ref.dtype)


# ---------------------------------------------------------------------------
# Wrapper
# ---------------------------------------------------------------------------
def _pick_batch_tile(batch):
    try:
        kind = jax.devices()[0].device_kind.lower()
    except Exception:
        kind = ""
    # v7x has 2 TensorCores/chip -> keep a >=2-wide parallel grid axis.
    # Single-TC chips (v5e/v6e) -> collapse the grid (per-step overhead >> compute).
    return 1 if "v7" in kind else batch


def encoder_layer(src, mask, params, batch_tile=None):
    """src: (B, S, D) f32; mask: (B, 1, S) f32 with 1=keep / 0=mask."""
    (gamma, beta, wq, bq, wk, bk, wv, bv, wo, bo, w1, b1, w2, b2) = params
    Bn, Sn, Dn = src.shape

    bt = batch_tile if batch_tile is not None else _pick_batch_tile(Bn)
    if bt <= 0 or Bn % bt != 0:
        bt = 1
    n_blocks = Bn // bt

    # fuse Q/K/V weights into one (D, 3D) matmul operand
    wqkv = jnp.concatenate([wq, wk, wv], axis=1)     # (D, 3D)
    bqkv = jnp.concatenate([bq, bk, bv], axis=1)     # (1, 3D)

    src2 = src.reshape(Bn * Sn, Dn)                  # free reshape, outside kernel

    full = lambda shape: pl.BlockSpec(shape, lambda i: (0,) * len(shape))
    in_specs = [
        pl.BlockSpec((bt * Sn, Dn), lambda i: (i, 0)),     # token rows per block
        pl.BlockSpec((bt, 1, Sn), lambda i: (i, 0, 0)),    # mask per block
        full((1, Dn)), full((1, Dn)),                      # gamma, beta (shared LN)
        full((Dn, 3 * Dn)), full((1, 3 * Dn)),             # wqkv, bqkv
        full((Dn, Dn)), full((1, Dn)),                     # wo, bo
        full((Dn, D_FF)), full((1, D_FF)),                 # w1, b1
        full((D_FF, Dn)), full((1, Dn)),                   # w2, b2
    ]
    out_spec = pl.BlockSpec((bt * Sn, Dn), lambda i: (i, 0))

    # advisory cost estimate (scheduling hygiene for the surrounding graph)
    tokens = Bn * Sn
    mm_flops = (2 * tokens * Dn * 3 * Dn                  # fused qkv
                + 2 * tokens * Dn * Dn                    # wo
                + 2 * tokens * Dn * D_FF * 2              # ffn
                + 2 * 2 * Bn * HEADS * Sn * Sn * D_K)     # scores + p@v
    n_params = sum(int(np.prod(t.shape)) for t in
                   (gamma, beta, wqkv, bqkv, wo, bo, w1, b1, w2, b2))
    cost = pl.CostEstimate(
        flops=int(mm_flops + 12 * tokens * Dn),
        transcendentals=int(Bn * HEADS * Sn * Sn + 2 * tokens),
        bytes_accessed=int(4 * (2 * tokens * Dn + Bn * Sn + n_params)),
    )

    kernel = partial(encoder_layer_kernel, bt=bt, seq=Sn, heads=HEADS,
                     d_k=Dn // HEADS)

    out = pl.pallas_call(
        kernel,
        out_shape=jax.ShapeDtypeStruct((Bn * Sn, Dn), src.dtype),
        grid_spec=pltpu.PrefetchScalarGridSpec(
            num_scalar_prefetch=0,
            grid=(n_blocks,),
            in_specs=in_specs,
            out_specs=out_spec,
        ),
        compiler_params=pltpu.CompilerParams(
            dimension_semantics=("parallel",)),
        cost_estimate=cost,
    )(src2, mask, gamma, beta, wqkv, bqkv, wo, bo, w1, b1, w2, b2)

    return out.reshape(Bn, Sn, Dn)


# ---------------------------------------------------------------------------
# Pure-JAX reference (mirrors PyTorch eval-mode semantics) for verification
# ---------------------------------------------------------------------------
def encoder_layer_ref(src, mask, params):
    (gamma, beta, wq, bq, wk, bk, wv, bv, wo, bo, w1, b1, w2, b2) = params

    def layernorm(x):
        mu = jnp.mean(x, axis=-1, keepdims=True)
        var = jnp.mean((x - mu) ** 2, axis=-1, keepdims=True)
        return (x - mu) / jnp.sqrt(var + LN_EPS) * gamma + beta

    x = layernorm(src)
    q = x @ wq + bq
    k = x @ wk + bk
    v = x @ wv + bv
    qh = q.reshape(B, S, HEADS, D_K).transpose(0, 2, 1, 3)
    kh = k.reshape(B, S, HEADS, D_K).transpose(0, 2, 1, 3)
    vh = v.reshape(B, S, HEADS, D_K).transpose(0, 2, 1, 3)
    scores = jnp.einsum("bhqd,bhkd->bhqk", qh, kh) / math.sqrt(D_K)
    scores = jnp.where(mask[:, None, :, :] == 0.0, -1e9, scores)
    p = jax.nn.softmax(scores, axis=-1)
    ctx = jnp.einsum("bhqk,bhkd->bhqd", p, vh).transpose(0, 2, 1, 3).reshape(B, S, D_MODEL)
    attn_out = ctx @ wo + bo
    src = src + attn_out
    x = layernorm(src)
    ff = jnp.maximum(x @ w1 + b1, 0.0) @ w2 + b2
    return src + ff


# ---------------------------------------------------------------------------
# Deterministic parameter / input construction
# ---------------------------------------------------------------------------
def make_params(key):
    ks = jax.random.split(key, 16)
    n = lambda k, shape, s=0.05: (s * jax.random.normal(k, shape)).astype(jnp.float32)
    gamma = (1.0 + n(ks[0], (1, D_MODEL), 0.1))
    beta = n(ks[1], (1, D_MODEL), 0.1)
    wq, bq = n(ks[2], (D_MODEL, D_MODEL)), n(ks[3], (1, D_MODEL))
    wk, bk = n(ks[4], (D_MODEL, D_MODEL)), n(ks[5], (1, D_MODEL))
    wv, bv = n(ks[6], (D_MODEL, D_MODEL)), n(ks[7], (1, D_MODEL))
    wo, bo = n(ks[8], (D_MODEL, D_MODEL)), n(ks[9], (1, D_MODEL))
    w1, b1 = n(ks[10], (D_MODEL, D_FF)), n(ks[11], (1, D_FF))
    w2, b2 = n(ks[12], (D_FF, D_MODEL)), n(ks[13], (1, D_MODEL))
    return (gamma, beta, wq, bq, wk, bk, wv, bv, wo, bo, w1, b1, w2, b2)


if __name__ == "__main__":
    key = jax.random.PRNGKey(0)
    k_src, k_par = jax.random.split(key)

    src = jax.random.normal(k_src, (B, S, D_MODEL), dtype=jnp.float32)
    # mask: 1 = attend, 0 = masked (e.g. padding); per-batch valid lengths
    lengths = jnp.array([S, 5])
    mask = (jnp.arange(S)[None, :] < lengths[:, None]).astype(jnp.float32)
    mask = mask[:, None, :]                      # (B, 1, S)

    params = make_params(k_par)

    out = jax.block_until_ready(encoder_layer(src, mask, params))
    ref = jax.block_until_ready(encoder_layer_ref(src, mask, params))

    # slightly relaxed tolerance: softmax uses the EUP approx reciprocal
    np.testing.assert_allclose(np.asarray(out), np.asarray(ref), rtol=1e-3, atol=1e-3)

    print("KERNEL_OK")
</pallas_src>

<mosaic_0001>
module attributes {stable_mosaic.version = 11 : i64} {
  func.func @encoder_layer_kernel(%arg0: i32, %arg1: memref<16x32xf32, #tpu.memory_space<vmem>>, %arg2: memref<2x1x8xf32, #tpu.memory_space<vmem>>, %arg3: memref<1x32xf32, #tpu.memory_space<vmem>>, %arg4: memref<1x32xf32, #tpu.memory_space<vmem>>, %arg5: memref<32x96xf32, #tpu.memory_space<vmem>>, %arg6: memref<1x96xf32, #tpu.memory_space<vmem>>, %arg7: memref<32x32xf32, #tpu.memory_space<vmem>>, %arg8: memref<1x32xf32, #tpu.memory_space<vmem>>, %arg9: memref<32x64xf32, #tpu.memory_space<vmem>>, %arg10: memref<1x64xf32, #tpu.memory_space<vmem>>, %arg11: memref<64x32xf32, #tpu.memory_space<vmem>>, %arg12: memref<1x32xf32, #tpu.memory_space<vmem>>, %arg13: memref<16x32xf32, #tpu.memory_space<vmem>>) attributes {dimension_semantics = [#tpu.dimension_semantics<parallel>], iteration_bounds = array<i64: 1>, scalar_prefetch = 0 : i64, scratch_operands = 0 : i64, tpu.core_type = #tpu.core_type<tc>, window_params = [{transform_indices = @transform_0, window_bounds = array<i64: 16, 32>}, {transform_indices = @transform_1, window_bounds = array<i64: 2, 1, 8>}, {pipeline_mode = #tpu.pipeline_mode<synchronous>, transform_indices = @transform_2, window_bounds = array<i64: 1, 32>}, {pipeline_mode = #tpu.pipeline_mode<synchronous>, transform_indices = @transform_3, window_bounds = array<i64: 1, 32>}, {pipeline_mode = #tpu.pipeline_mode<synchronous>, transform_indices = @transform_4, window_bounds = array<i64: 32, 96>}, {pipeline_mode = #tpu.pipeline_mode<synchronous>, transform_indices = @transform_5, window_bounds = array<i64: 1, 96>}, {pipeline_mode = #tpu.pipeline_mode<synchronous>, transform_indices = @transform_6, window_bounds = array<i64: 32, 32>}, {pipeline_mode = #tpu.pipeline_mode<synchronous>, transform_indices = @transform_7, window_bounds = array<i64: 1, 32>}, {pipeline_mode = #tpu.pipeline_mode<synchronous>, transform_indices = @transform_8, window_bounds = array<i64: 32, 64>}, {pipeline_mode = #tpu.pipeline_mode<synchronous>, transform_indices = @transform_9, window_bounds = array<i64: 1, 64>}, {pipeline_mode = #tpu.pipeline_mode<synchronous>, transform_indices = @transform_10, window_bounds = array<i64: 64, 32>}, {pipeline_mode = #tpu.pipeline_mode<synchronous>, transform_indices = @transform_11, window_bounds = array<i64: 1, 32>}, {transform_indices = @transform_12, window_bounds = array<i64: 16, 32>}]} {
    %c0 = arith.constant 0 : index
    %c0_0 = arith.constant 0 : index
    %0 = vector.load %arg1[%c0, %c0_0] : memref<16x32xf32, #tpu.memory_space<vmem>>, vector<16x32xf32>
    %c0_1 = arith.constant 0 : index
    %c0_2 = arith.constant 0 : index
    %1 = vector.load %arg3[%c0_1, %c0_2] : memref<1x32xf32, #tpu.memory_space<vmem>>, vector<1x32xf32>
    %c0_3 = arith.constant 0 : index
    %c0_4 = arith.constant 0 : index
    %2 = vector.load %arg4[%c0_3, %c0_4] : memref<1x32xf32, #tpu.memory_space<vmem>>, vector<1x32xf32>
    %cst = arith.constant dense<0.000000e+00> : vector<16xf32>
    %3 = vector.multi_reduction <add>, %0, %cst [1] : vector<16x32xf32> to vector<16xf32>
    %4 = vector.shape_cast %3 : vector<16xf32> to vector<16x1xf32>
    %cst_5 = arith.constant 3.200000e+01 : f32
    %5 = vector.broadcast %cst_5 : f32 to vector<16x1xf32>
    %6 = arith.divf %4, %5 : vector<16x1xf32>
    %7 = vector.broadcast %6 : vector<16x1xf32> to vector<16x32xf32>
    %8 = arith.subf %0, %7 : vector<16x32xf32>
    %9 = arith.mulf %8, %8 : vector<16x32xf32>
    %cst_6 = arith.constant dense<0.000000e+00> : vector<16xf32>
    %10 = vector.multi_reduction <add>, %9, %cst_6 [1] : vector<16x32xf32> to vector<16xf32>
    %11 = vector.shape_cast %10 : vector<16xf32> to vector<16x1xf32>
    %cst_7 = arith.constant 3.200000e+01 : f32
    %12 = vector.broadcast %cst_7 : f32 to vector<16x1xf32>
    %13 = arith.divf %11, %12 : vector<16x1xf32>
    %14 = vector.broadcast %6 : vector<16x1xf32> to vector<16x32xf32>
    %15 = arith.subf %0, %14 : vector<16x32xf32>
    %cst_8 = arith.constant 9.99999974E-6 : f32
    %16 = vector.broadcast %cst_8 : f32 to vector<16x1xf32>
    %17 = arith.addf %13, %16 : vector<16x1xf32>
    %18 = math.rsqrt %17 : vector<16x1xf32>
    %19 = vector.broadcast %18 : vector<16x1xf32> to vector<16x32xf32>
    %20 = arith.mulf %15, %19 : vector<16x32xf32>
    %21 = vector.broadcast %1 : vector<1x32xf32> to vector<16x32xf32>
    %22 = arith.mulf %20, %21 : vector<16x32xf32>
    %23 = vector.broadcast %2 : vector<1x32xf32> to vector<16x32xf32>
    %24 = arith.addf %22, %23 : vector<16x32xf32>
    %c0_9 = arith.constant 0 : index
    %c0_10 = arith.constant 0 : index
    %25 = vector.load %arg5[%c0_9, %c0_10] : memref<32x96xf32, #tpu.memory_space<vmem>>, vector<32x96xf32>
    %cst_11 = arith.constant dense<0.000000e+00> : vector<16x96xf32>
    %26 = tpu.matmul %24, %25, %cst_11 {dimension_numbers = #tpu.dot_dimension_numbers<[1], [0], [0], [1], [0, 0, 1, 1], [], []>} : vector<16x32xf32>, vector<32x96xf32>, vector<16x96xf32> -> vector<16x96xf32>
    %c0_12 = arith.constant 0 : index
    %c0_13 = arith.constant 0 : index
    %27 = vector.load %arg6[%c0_12, %c0_13] : memref<1x96xf32, #tpu.memory_space<vmem>>, vector<1x96xf32>
    %28 = vector.broadcast %27 : vector<1x96xf32> to vector<16x96xf32>
    %29 = arith.addf %26, %28 : vector<16x96xf32>
    %30 = vector.extract_strided_slice %29 {offsets = [0, 0], sizes = [16, 32], strides = [1, 1]} : vector<16x96xf32> to vector<16x32xf32>
    %cst_14 = arith.constant 0.353553385 : f32
    %31 = vector.broadcast %cst_14 : f32 to vector<16x32xf32>
    %32 = arith.mulf %30, %31 : vector<16x32xf32>
    %33 = vector.extract_strided_slice %29 {offsets = [0, 32], sizes = [16, 32], strides = [1, 1]} : vector<16x96xf32> to vector<16x32xf32>
    %34 = vector.extract_strided_slice %29 {offsets = [0, 64], sizes = [16, 32], strides = [1, 1]} : vector<16x96xf32> to vector<16x32xf32>
    %c0_15 = arith.constant 0 : index
    %c0_16 = arith.constant 0 : index
    %c0_17 = arith.constant 0 : index
    %35 = vector.load %arg2[%c0_15, %c0_16, %c0_17] : memref<2x1x8xf32, #tpu.memory_space<vmem>>, vector<2x1x8xf32>
    %cst_18 = arith.constant 0.000000e+00 : f32
    %36 = vector.broadcast %cst_18 : f32 to vector<2x1x8xf32>
    %37 = arith.cmpf oeq, %35, %36 : vector<2x1x8xf32>
    %cst_19 = arith.constant -1.000000e+09 : f32
    %cst_20 = arith.constant 0.000000e+00 : f32
    %38 = vector.broadcast %cst_19 : f32 to vector<2x1x8xf32>
    %39 = vector.broadcast %cst_20 : f32 to vector<2x1x8xf32>
    %40 = arith.select %37, %38, %39 : vector<2x1x8xi1>, vector<2x1x8xf32>
    %41 = vector.extract_strided_slice %32 {offsets = [0, 0], sizes = [8, 32], strides = [1, 1]} : vector<16x32xf32> to vector<8x32xf32>
    %42 = vector.extract_strided_slice %33 {offsets = [0, 0], sizes = [8, 32], strides = [1, 1]} : vector<16x32xf32> to vector<8x32xf32>
    %43 = vector.extract_strided_slice %40 {offsets = [0, 0, 0], sizes = [1, 1, 8], strides = [1, 1, 1]} : vector<2x1x8xf32> to vector<1x1x8xf32>
    %44 = vector.shape_cast %43 : vector<1x1x8xf32> to vector<1x8xf32>
    %45 = vector.extract_strided_slice %41 {offsets = [0, 0], sizes = [8, 8], strides = [1, 1]} : vector<8x32xf32> to vector<8x8xf32>
    %46 = vector.extract_strided_slice %42 {offsets = [0, 0], sizes = [8, 8], strides = [1, 1]} : vector<8x32xf32> to vector<8x8xf32>
    %47 = tpu.transpose %46, [1, 0] : vector<8x8xf32> -> vector<8x8xf32>
    %cst_21 = arith.constant dense<0.000000e+00> : vector<8x8xf32>
    %48 = tpu.matmul %45, %47, %cst_21 {dimension_numbers = #tpu.dot_dimension_numbers<[1], [0], [0], [1], [0, 0, 1, 1], [], []>} : vector<8x8xf32>, vector<8x8xf32>, vector<8x8xf32> -> vector<8x8xf32>
    %49 = vector.broadcast %44 : vector<1x8xf32> to vector<8x8xf32>
    %50 = arith.addf %48, %49 : vector<8x8xf32>
    %51 = vector.extract_strided_slice %41 {offsets = [0, 8], sizes = [8, 8], strides = [1, 1]} : vector<8x32xf32> to vector<8x8xf32>
    %52 = vector.extract_strided_slice %42 {offsets = [0, 8], sizes = [8, 8], strides = [1, 1]} : vector<8x32xf32> to vector<8x8xf32>
    %53 = tpu.transpose %52, [1, 0] : vector<8x8xf32> -> vector<8x8xf32>
    %cst_22 = arith.constant dense<0.000000e+00> : vector<8x8xf32>
    %54 = tpu.matmul %51, %53, %cst_22 {dimension_numbers = #tpu.dot_dimension_numbers<[1], [0], [0], [1], [0, 0, 1, 1], [], []>} : vector<8x8xf32>, vector<8x8xf32>, vector<8x8xf32> -> vector<8x8xf32>
    %55 = vector.broadcast %44 : vector<1x8xf32> to vector<8x8xf32>
    %56 = arith.addf %54, %55 : vector<8x8xf32>
    %57 = vector.extract_strided_slice %41 {offsets = [0, 16], sizes = [8, 8], strides = [1, 1]} : vector<8x32xf32> to vector<8x8xf32>
    %58 = vector.extract_strided_slice %42 {offsets = [0, 16], sizes = [8, 8], strides = [1, 1]} : vector<8x32xf32> to vector<8x8xf32>
    %59 = tpu.transpose %58, [1, 0] : vector<8x8xf32> -> vector<8x8xf32>
    %cst_23 = arith.constant dense<0.000000e+00> : vector<8x8xf32>
    %60 = tpu.matmul %57, %59, %cst_23 {dimension_numbers = #tpu.dot_dimension_numbers<[1], [0], [0], [1], [0, 0, 1, 1], [], []>} : vector<8x8xf32>, vector<8x8xf32>, vector<8x8xf32> -> vector<8x8xf32>
    %61 = vector.broadcast %44 : vector<1x8xf32> to vector<8x8xf32>
    %62 = arith.addf %60, %61 : vector<8x8xf32>
    %63 = vector.extract_strided_slice %41 {offsets = [0, 24], sizes = [8, 8], strides = [1, 1]} : vector<8x32xf32> to vector<8x8xf32>
    %64 = vector.extract_strided_slice %42 {offsets = [0, 24], sizes = [8, 8], strides = [1, 1]} : vector<8x32xf32> to vector<8x8xf32>
    %65 = tpu.transpose %64, [1, 0] : vector<8x8xf32> -> vector<8x8xf32>
    %cst_24 = arith.constant dense<0.000000e+00> : vector<8x8xf32>
    %66 = tpu.matmul %63, %65, %cst_24 {dimension_numbers = #tpu.dot_dimension_numbers<[1], [0], [0], [1], [0, 0, 1, 1], [], []>} : vector<8x8xf32>, vector<8x8xf32>, vector<8x8xf32> -> vector<8x8xf32>
    %67 = vector.broadcast %44 : vector<1x8xf32> to vector<8x8xf32>
    %68 = arith.addf %66, %67 : vector<8x8xf32>
    %69 = vector.extract_strided_slice %32 {offsets = [8, 0], sizes = [8, 32], strides = [1, 1]} : vector<16x32xf32> to vector<8x32xf32>
    %70 = vector.extract_strided_slice %33 {offsets = [8, 0], sizes = [8, 32], strides = [1, 1]} : vector<16x32xf32> to vector<8x32xf32>
    %71 = vector.extract_strided_slice %40 {offsets = [1, 0, 0], sizes = [1, 1, 8], strides = [1, 1, 1]} : vector<2x1x8xf32> to vector<1x1x8xf32>
    %72 = vector.shape_cast %71 : vector<1x1x8xf32> to vector<1x8xf32>
    %73 = vector.extract_strided_slice %69 {offsets = [0, 0], sizes = [8, 8], strides = [1, 1]} : vector<8x32xf32> to vector<8x8xf32>
    %74 = vector.extract_strided_slice %70 {offsets = [0, 0], sizes = [8, 8], strides = [1, 1]} : vector<8x32xf32> to vector<8x8xf32>
    %75 = tpu.transpose %74, [1, 0] : vector<8x8xf32> -> vector<8x8xf32>
    %cst_25 = arith.constant dense<0.000000e+00> : vector<8x8xf32>
    %76 = tpu.matmul %73, %75, %cst_25 {dimension_numbers = #tpu.dot_dimension_numbers<[1], [0], [0], [1], [0, 0, 1, 1], [], []>} : vector<8x8xf32>, vector<8x8xf32>, vector<8x8xf32> -> vector<8x8xf32>
    %77 = vector.broadcast %72 : vector<1x8xf32> to vector<8x8xf32>
    %78 = arith.addf %76, %77 : vector<8x8xf32>
    %79 = vector.extract_strided_slice %69 {offsets = [0, 8], sizes = [8, 8], strides = [1, 1]} : vector<8x32xf32> to vector<8x8xf32>
    %80 = vector.extract_strided_slice %70 {offsets = [0, 8], sizes = [8, 8], strides = [1, 1]} : vector<8x32xf32> to vector<8x8xf32>
    %81 = tpu.transpose %80, [1, 0] : vector<8x8xf32> -> vector<8x8xf32>
    %cst_26 = arith.constant dense<0.000000e+00> : vector<8x8xf32>
    %82 = tpu.matmul %79, %81, %cst_26 {dimension_numbers = #tpu.dot_dimension_numbers<[1], [0], [0], [1], [0, 0, 1, 1], [], []>} : vector<8x8xf32>, vector<8x8xf32>, vector<8x8xf32> -> vector<8x8xf32>
    %83 = vector.broadcast %72 : vector<1x8xf32> to vector<8x8xf32>
    %84 = arith.addf %82, %83 : vector<8x8xf32>
    %85 = vector.extract_strided_slice %69 {offsets = [0, 16], sizes = [8, 8], strides = [1, 1]} : vector<8x32xf32> to vector<8x8xf32>
    %86 = vector.extract_strided_slice %70 {offsets = [0, 16], sizes = [8, 8], strides = [1, 1]} : vector<8x32xf32> to vector<8x8xf32>
    %87 = tpu.transpose %86, [1, 0] : vector<8x8xf32> -> vector<8x8xf32>
    %cst_27 = arith.constant dense<0.000000e+00> : vector<8x8xf32>
    %88 = tpu.matmul %85, %87, %cst_27 {dimension_numbers = #tpu.dot_dimension_numbers<[1], [0], [0], [1], [0, 0, 1, 1], [], []>} : vector<8x8xf32>, vector<8x8xf32>, vector<8x8xf32> -> vector<8x8xf32>
    %89 = vector.broadcast %72 : vector<1x8xf32> to vector<8x8xf32>
    %90 = arith.addf %88, %89 : vector<8x8xf32>
    %91 = vector.extract_strided_slice %69 {offsets = [0, 24], sizes = [8, 8], strides = [1, 1]} : vector<8x32xf32> to vector<8x8xf32>
    %92 = vector.extract_strided_slice %70 {offsets = [0, 24], sizes = [8, 8], strides = [1, 1]} : vector<8x32xf32> to vector<8x8xf32>
    %93 = tpu.transpose %92, [1, 0] : vector<8x8xf32> -> vector<8x8xf32>
    %cst_28 = arith.constant dense<0.000000e+00> : vector<8x8xf32>
    %94 = tpu.matmul %91, %93, %cst_28 {dimension_numbers = #tpu.dot_dimension_numbers<[1], [0], [0], [1], [0, 0, 1, 1], [], []>} : vector<8x8xf32>, vector<8x8xf32>, vector<8x8xf32> -> vector<8x8xf32>
    %95 = vector.broadcast %72 : vector<1x8xf32> to vector<8x8xf32>
    %96 = arith.addf %94, %95 : vector<8x8xf32>
    %97 = tpu.concatenate %50, %56, %62, %68, %78, %84, %90, %96 in 0 : vector<8x8xf32>, vector<8x8xf32>, vector<8x8xf32>, vector<8x8xf32>, vector<8x8xf32>, vector<8x8xf32>, vector<8x8xf32>, vector<8x8xf32> -> vector<64x8xf32>
    %cst_29 = arith.constant dense<0xFF800000> : vector<64xf32>
    %98 = vector.multi_reduction <maximumf>, %97, %cst_29 [1] : vector<64x8xf32> to vector<64xf32>
    %99 = vector.shape_cast %98 : vector<64xf32> to vector<64x1xf32>
    %100 = vector.broadcast %99 : vector<64x1xf32> to vector<64x8xf32>
    %101 = arith.subf %97, %100 : vector<64x8xf32>
    %102 = math.exp %101 : vector<64x8xf32>
    %cst_30 = arith.constant dense<0.000000e+00> : vector<64xf32>
    %103 = vector.multi_reduction <add>, %102, %cst_30 [1] : vector<64x8xf32> to vector<64xf32>
    %104 = vector.shape_cast %103 : vector<64xf32> to vector<64x1xf32>
    %105 = tpu.reciprocal %104 {approx = true} : vector<64x1xf32> -> vector<64x1xf32>
    %106 = vector.broadcast %105 : vector<64x1xf32> to vector<64x8xf32>
    %107 = arith.mulf %102, %106 : vector<64x8xf32>
    %108 = vector.extract_strided_slice %34 {offsets = [0, 0], sizes = [8, 32], strides = [1, 1]} : vector<16x32xf32> to vector<8x32xf32>
    %109 = vector.extract_strided_slice %107 {offsets = [0, 0], sizes = [8, 8], strides = [1, 1]} : vector<64x8xf32> to vector<8x8xf32>
    %110 = vector.extract_strided_slice %108 {offsets = [0, 0], sizes = [8, 8], strides = [1, 1]} : vector<8x32xf32> to vector<8x8xf32>
    %cst_31 = arith.constant dense<0.000000e+00> : vector<8x8xf32>
    %111 = tpu.matmul %109, %110, %cst_31 {dimension_numbers = #tpu.dot_dimension_numbers<[1], [0], [0], [1], [0, 0, 1, 1], [], []>} : vector<8x8xf32>, vector<8x8xf32>, vector<8x8xf32> -> vector<8x8xf32>
    %112 = vector.extract_strided_slice %107 {offsets = [8, 0], sizes = [8, 8], strides = [1, 1]} : vector<64x8xf32> to vector<8x8xf32>
    %113 = vector.extract_strided_slice %108 {offsets = [0, 8], sizes = [8, 8], strides = [1, 1]} : vector<8x32xf32> to vector<8x8xf32>
    %cst_32 = arith.constant dense<0.000000e+00> : vector<8x8xf32>
    %114 = tpu.matmul %112, %113, %cst_32 {dimension_numbers = #tpu.dot_dimension_numbers<[1], [0], [0], [1], [0, 0, 1, 1], [], []>} : vector<8x8xf32>, vector<8x8xf32>, vector<8x8xf32> -> vector<8x8xf32>
    %115 = vector.extract_strided_slice %107 {offsets = [16, 0], sizes = [8, 8], strides = [1, 1]} : vector<64x8xf32> to vector<8x8xf32>
    %116 = vector.extract_strided_slice %108 {offsets = [0, 16], sizes = [8, 8], strides = [1, 1]} : vector<8x32xf32> to vector<8x8xf32>
    %cst_33 = arith.constant dense<0.000000e+00> : vector<8x8xf32>
    %117 = tpu.matmul %115, %116, %cst_33 {dimension_numbers = #tpu.dot_dimension_numbers<[1], [0], [0], [1], [0, 0, 1, 1], [], []>} : vector<8x8xf32>, vector<8x8xf32>, vector<8x8xf32> -> vector<8x8xf32>
    %118 = vector.extract_strided_slice %107 {offsets = [24, 0], sizes = [8, 8], strides = [1, 1]} : vector<64x8xf32> to vector<8x8xf32>
    %119 = vector.extract_strided_slice %108 {offsets = [0, 24], sizes = [8, 8], strides = [1, 1]} : vector<8x32xf32> to vector<8x8xf32>
    %cst_34 = arith.constant dense<0.000000e+00> : vector<8x8xf32>
    %120 = tpu.matmul %118, %119, %cst_34 {dimension_numbers = #tpu.dot_dimension_numbers<[1], [0], [0], [1], [0, 0, 1, 1], [], []>} : vector<8x8xf32>, vector<8x8xf32>, vector<8x8xf32> -> vector<8x8xf32>
    %121 = tpu.concatenate %111, %114, %117, %120 in 1 : vector<8x8xf32>, vector<8x8xf32>, vector<8x8xf32>, vector<8x8xf32> -> vector<8x32xf32>
    %122 = vector.extract_strided_slice %34 {offsets = [8, 0], sizes = [8, 32], strides = [1, 1]} : vector<16x32xf32> to vector<8x32xf32>
    %123 = vector.extract_strided_slice %107 {offsets = [32, 0], sizes = [8, 8], strides = [1, 1]} : vector<64x8xf32> to vector<8x8xf32>
    %124 = vector.extract_strided_slice %122 {offsets = [0, 0], sizes = [8, 8], strides = [1, 1]} : vector<8x32xf32> to vector<8x8xf32>
    %cst_35 = arith.constant dense<0.000000e+00> : vector<8x8xf32>
    %125 = tpu.matmul %123, %124, %cst_35 {dimension_numbers = #tpu.dot_dimension_numbers<[1], [0], [0], [1], [0, 0, 1, 1], [], []>} : vector<8x8xf32>, vector<8x8xf32>, vector<8x8xf32> -> vector<8x8xf32>
    %126 = vector.extract_strided_slice %107 {offsets = [40, 0], sizes = [8, 8], strides = [1, 1]} : vector<64x8xf32> to vector<8x8xf32>
    %127 = vector.extract_strided_slice %122 {offsets = [0, 8], sizes = [8, 8], strides = [1, 1]} : vector<8x32xf32> to vector<8x8xf32>
    %cst_36 = arith.constant dense<0.000000e+00> : vector<8x8xf32>
    %128 = tpu.matmul %126, %127, %cst_36 {dimension_numbers = #tpu.dot_dimension_numbers<[1], [0], [0], [1], [0, 0, 1, 1], [], []>} : vector<8x8xf32>, vector<8x8xf32>, vector<8x8xf32> -> vector<8x8xf32>
    %129 = vector.extract_strided_slice %107 {offsets = [48, 0], sizes = [8, 8], strides = [1, 1]} : vector<64x8xf32> to vector<8x8xf32>
    %130 = vector.extract_strided_slice %122 {offsets = [0, 16], sizes = [8, 8], strides = [1, 1]} : vector<8x32xf32> to vector<8x8xf32>
    %cst_37 = arith.constant dense<0.000000e+00> : vector<8x8xf32>
    %131 = tpu.matmul %129, %130, %cst_37 {dimension_numbers = #tpu.dot_dimension_numbers<[1], [0], [0], [1], [0, 0, 1, 1], [], []>} : vector<8x8xf32>, vector<8x8xf32>, vector<8x8xf32> -> vector<8x8xf32>
    %132 = vector.extract_strided_slice %107 {offsets = [56, 0], sizes = [8, 8], strides = [1, 1]} : vector<64x8xf32> to vector<8x8xf32>
    %133 = vector.extract_strided_slice %122 {offsets = [0, 24], sizes = [8, 8], strides = [1, 1]} : vector<8x32xf32> to vector<8x8xf32>
    %cst_38 = arith.constant dense<0.000000e+00> : vector<8x8xf32>
    %134 = tpu.matmul %132, %133, %cst_38 {dimension_numbers = #tpu.dot_dimension_numbers<[1], [0], [0], [1], [0, 0, 1, 1], [], []>} : vector<8x8xf32>, vector<8x8xf32>, vector<8x8xf32> -> vector<8x8xf32>
    %135 = tpu.concatenate %125, %128, %131, %134 in 1 : vector<8x8xf32>, vector<8x8xf32>, vector<8x8xf32>, vector<8x8xf32> -> vector<8x32xf32>
    %136 = tpu.concatenate %121, %135 in 0 : vector<8x32xf32>, vector<8x32xf32> -> vector<16x32xf32>
    %c0_39 = arith.constant 0 : index
    %c0_40 = arith.constant 0 : index
    %137 = vector.load %arg7[%c0_39, %c0_40] : memref<32x32xf32, #tpu.memory_space<vmem>>, vector<32x32xf32>
    %cst_41 = arith.constant dense<0.000000e+00> : vector<16x32xf32>
    %138 = tpu.matmul %136, %137, %cst_41 {dimension_numbers = #tpu.dot_dimension_numbers<[1], [0], [0], [1], [0, 0, 1, 1], [], []>} : vector<16x32xf32>, vector<32x32xf32>, vector<16x32xf32> -> vector<16x32xf32>
    %c0_42 = arith.constant 0 : index
    %c0_43 = arith.constant 0 : index
    %139 = vector.load %arg8[%c0_42, %c0_43] : memref<1x32xf32, #tpu.memory_space<vmem>>, vector<1x32xf32>
    %140 = vector.broadcast %139 : vector<1x32xf32> to vector<16x32xf32>
    %141 = arith.addf %138, %140 : vector<16x32xf32>
    %142 = arith.addf %0, %141 : vector<16x32xf32>
    %cst_44 = arith.constant dense<0.000000e+00> : vector<16xf32>
    %143 = vector.multi_reduction <add>, %142, %cst_44 [1] : vector<16x32xf32> to vector<16xf32>
    %144 = vector.shape_cast %143 : vector<16xf32> to vector<16x1xf32>
    %cst_45 = arith.constant 3.200000e+01 : f32
    %145 = vector.broadcast %cst_45 : f32 to vector<16x1xf32>
    %146 = arith.divf %144, %145 : vector<16x1xf32>
    %147 = vector.broadcast %146 : vector<16x1xf32> to vector<16x32xf32>
    %148 = arith.subf %142, %147 : vector<16x32xf32>
    %149 = arith.mulf %148, %148 : vector<16x32xf32>
    %cst_46 = arith.constant dense<0.000000e+00> : vector<16xf32>
    %150 = vector.multi_reduction <add>, %149, %cst_46 [1] : vector<16x32xf32> to vector<16xf32>
    %151 = vector.shape_cast %150 : vector<16xf32> to vector<16x1xf32>
    %cst_47 = arith.constant 3.200000e+01 : f32
    %152 = vector.broadcast %cst_47 : f32 to vector<16x1xf32>
    %153 = arith.divf %151, %152 : vector<16x1xf32>
    %154 = vector.broadcast %146 : vector<16x1xf32> to vector<16x32xf32>
    %155 = arith.subf %142, %154 : vector<16x32xf32>
    %cst_48 = arith.constant 9.99999974E-6 : f32
    %156 = vector.broadcast %cst_48 : f32 to vector<16x1xf32>
    %157 = arith.addf %153, %156 : vector<16x1xf32>
    %158 = math.rsqrt %157 : vector<16x1xf32>
    %159 = vector.broadcast %158 : vector<16x1xf32> to vector<16x32xf32>
    %160 = arith.mulf %155, %159 : vector<16x32xf32>
    %161 = vector.broadcast %1 : vector<1x32xf32> to vector<16x32xf32>
    %162 = arith.mulf %160, %161 : vector<16x32xf32>
    %163 = vector.broadcast %2 : vector<1x32xf32> to vector<16x32xf32>
    %164 = arith.addf %162, %163 : vector<16x32xf32>
    %c0_49 = arith.constant 0 : index
    %c0_50 = arith.constant 0 : index
    %165 = vector.load %arg9[%c0_49, %c0_50] : memref<32x64xf32, #tpu.memory_space<vmem>>, vector<32x64xf32>
    %cst_51 = arith.constant dense<0.000000e+00> : vector<16x64xf32>
    %166 = tpu.matmul %164, %165, %cst_51 {dimension_numbers = #tpu.dot_dimension_numbers<[1], [0], [0], [1], [0, 0, 1, 1], [], []>} : vector<16x32xf32>, vector<32x64xf32>, vector<16x64xf32> -> vector<16x64xf32>
    %c0_52 = arith.constant 0 : index
    %c0_53 = arith.constant 0 : index
    %167 = vector.load %arg10[%c0_52, %c0_53] : memref<1x64xf32, #tpu.memory_space<vmem>>, vector<1x64xf32>
    %168 = vector.broadcast %167 : vector<1x64xf32> to vector<16x64xf32>
    %169 = arith.addf %166, %168 : vector<16x64xf32>
    %cst_54 = arith.constant 0.000000e+00 : f32
    %170 = vector.broadcast %cst_54 : f32 to vector<16x64xf32>
    %171 = arith.maximumf %169, %170 : vector<16x64xf32>
    %c0_55 = arith.constant 0 : index
    %c0_56 = arith.constant 0 : index
    %172 = vector.load %arg11[%c0_55, %c0_56] : memref<64x32xf32, #tpu.memory_space<vmem>>, vector<64x32xf32>
    %cst_57 = arith.constant dense<0.000000e+00> : vector<16x32xf32>
    %173 = tpu.matmul %171, %172, %cst_57 {dimension_numbers = #tpu.dot_dimension_numbers<[1], [0], [0], [1], [0, 0, 1, 1], [], []>} : vector<16x64xf32>, vector<64x32xf32>, vector<16x32xf32> -> vector<16x32xf32>
    %c0_58 = arith.constant 0 : index
    %c0_59 = arith.constant 0 : index
    %174 = vector.load %arg12[%c0_58, %c0_59] : memref<1x32xf32, #tpu.memory_space<vmem>>, vector<1x32xf32>
    %175 = vector.broadcast %174 : vector<1x32xf32> to vector<16x32xf32>
    %176 = arith.addf %173, %175 : vector<16x32xf32>
    %177 = arith.addf %142, %176 : vector<16x32xf32>
    %c0_60 = arith.constant 0 : index
    %c0_61 = arith.constant 0 : index
    %178 = vector.load %arg13[%c0_60, %c0_61] : memref<16x32xf32, #tpu.memory_space<vmem>>, vector<16x32xf32>
    tpu.vector_store %arg13[%c0_60, %c0_61], %177 {strides = array<i32>} : memref<16x32xf32, #tpu.memory_space<vmem>>, vector<16x32xf32>,
    return
  }
  func.func @transform_0(%arg0: i32) -> (i32, i32) {
    %c0_i32 = arith.constant 0 : i32
    %c0_i32_0 = arith.constant 0 : i32
    return %arg0, %c0_i32 : i32, i32
  }
  func.func @transform_1(%arg0: i32) -> (i32, i32, i32) {
    %c0_i32 = arith.constant 0 : i32
    %c0_i32_0 = arith.constant 0 : i32
    %c0_i32_1 = arith.constant 0 : i32
    return %arg0, %c0_i32, %c0_i32_0 : i32, i32, i32
  }
  func.func @transform_2(%arg0: i32) -> (i32, i32) {
    %c0_i32 = arith.constant 0 : i32
    %c0_i32_0 = arith.constant 0 : i32
    %c0_i32_1 = arith.constant 0 : i32
    return %c0_i32, %c0_i32_0 : i32, i32
  }
  func.func @transform_3(%arg0: i32) -> (i32, i32) {
    %c0_i32 = arith.constant 0 : i32
    %c0_i32_0 = arith.constant 0 : i32
    %c0_i32_1 = arith.constant 0 : i32
    return %c0_i32, %c0_i32_0 : i32, i32
  }
  func.func @transform_4(%arg0: i32) -> (i32, i32) {
    %c0_i32 = arith.constant 0 : i32
    %c0_i32_0 = arith.constant 0 : i32
    %c0_i32_1 = arith.constant 0 : i32
    return %c0_i32, %c0_i32_0 : i32, i32
  }
  func.func @transform_5(%arg0: i32) -> (i32, i32) {
    %c0_i32 = arith.constant 0 : i32
    %c0_i32_0 = arith.constant 0 : i32
    %c0_i32_1 = arith.constant 0 : i32
    return %c0_i32, %c0_i32_0 : i32, i32
  }
  func.func @transform_6(%arg0: i32) -> (i32, i32) {
    %c0_i32 = arith.constant 0 : i32
    %c0_i32_0 = arith.constant 0 : i32
    %c0_i32_1 = arith.constant 0 : i32
    return %c0_i32, %c0_i32_0 : i32, i32
  }
  func.func @transform_7(%arg0: i32) -> (i32, i32) {
    %c0_i32 = arith.constant 0 : i32
    %c0_i32_0 = arith.constant 0 : i32
    %c0_i32_1 = arith.constant 0 : i32
    return %c0_i32, %c0_i32_0 : i32, i32
  }
  func.func @transform_8(%arg0: i32) -> (i32, i32) {
    %c0_i32 = arith.constant 0 : i32
    %c0_i32_0 = arith.constant 0 : i32
    %c0_i32_1 = arith.constant 0 : i32
    return %c0_i32, %c0_i32_0 : i32, i32
  }
  func.func @transform_9(%arg0: i32) -> (i32, i32) {
    %c0_i32 = arith.constant 0 : i32
    %c0_i32_0 = arith.constant 0 : i32
    %c0_i32_1 = arith.constant 0 : i32
    return %c0_i32, %c0_i32_0 : i32, i32
  }
  func.func @transform_10(%arg0: i32) -> (i32, i32) {
    %c0_i32 = arith.constant 0 : i32
    %c0_i32_0 = arith.constant 0 : i32
    %c0_i32_1 = arith.constant 0 : i32
    return %c0_i32, %c0_i32_0 : i32, i32
  }
  func.func @transform_11(%arg0: i32) -> (i32, i32) {
    %c0_i32 = arith.constant 0 : i32
    %c0_i32_0 = arith.constant 0 : i32
    %c0_i32_1 = arith.constant 0 : i32
    return %c0_i32, %c0_i32_0 : i32, i32
  }
  func.func @transform_12(%arg0: i32) -> (i32, i32) {
    %c0_i32 = arith.constant 0 : i32
    %c0_i32_0 = arith.constant 0 : i32
    return %arg0, %c0_i32 : i32, i32
  }
}

</mosaic_0001>

<llo_original>
// kernel: tpu_custom_call.1
$region0: #{tpu_custom_call.1}
  #allocation0 [shape = 'u32[]', space=smem, size = 0x4, offset = 0x4, fixed_abs, tag = 'smem constant byte address 0x4 - core index']
  #allocation1 [shape = 'u32[144,128]{1,0:T(1,128)}', space=vmem, size = 0x12000, scoped, tag = 'internal scratch']
  %s0 = inlined_call_operand.hbm [shape: f32[16,32], index: 0, kind: input, shape index: {}]
  %s1 = inlined_call_operand.vmem [shape: f32[2,1,8], index: 1, kind: input, shape index: {}]
  %s2 = inlined_call_operand.vmem [shape: f32[1,32], index: 2, kind: input, shape index: {}]
  %s3 = inlined_call_operand.vmem [shape: f32[1,32], index: 3, kind: input, shape index: {}]
  %s4 = inlined_call_operand.vmem [shape: f32[32,96], index: 4, kind: input, shape index: {}]
  %s5 = inlined_call_operand.vmem [shape: f32[1,96], index: 5, kind: input, shape index: {}]
  %s6 = inlined_call_operand.vmem [shape: f32[32,32], index: 6, kind: input, shape index: {}]
  %s7 = inlined_call_operand.hbm [shape: f32[1,32], index: 7, kind: input, shape index: {}]
  %s8 = inlined_call_operand.vmem [shape: f32[32,64], index: 8, kind: input, shape index: {}]
  %s9 = inlined_call_operand.hbm [shape: f32[1,64], index: 9, kind: input, shape index: {}]
  %s10 = inlined_call_operand.vmem [shape: f32[64,32], index: 10, kind: input, shape index: {}]
  %s11 = inlined_call_operand.vmem [shape: f32[1,32], index: 11, kind: input, shape index: {}]
  %s12 = inlined_call_operand.hbm [shape: f32[16,32], index: 12, kind: output, shape index: {}]
  %s13 = sld [smem:[#allocation0]]
  $region70: #{tpu_custom_call.1} parent=0
    _
  %s15 = ssub.s32 1, %s13
  %s16 = scalar_select 0, %s15, %s13
  $region1: #{tpu_custom_call.1} parent=0
    #allocation2 [shape = 'u8[8192]{0}', space=vmem, size = 0x2000, scoped, tag = 'input window, operand 0, single buffered']
    #allocation3 [shape = 's32[1]{0}', space=sflag, size = 0x4, scoped, tag = 'scoped memory for tpu_custom_call.1']
    #allocation4 [shape = 's32[1]{0}', space=sflag, size = 0x4, scoped, tag = 'scoped memory for tpu_custom_call.1']
    #allocation5 [shape = 'u8[512]{0}', space=vmem, size = 0x400, scoped, tag = 'input window, operand 7, single buffered']
    #allocation6 [shape = 's32[1]{0}', space=sflag, size = 0x4, scoped, tag = 'scoped memory for tpu_custom_call.1']
    #allocation7 [shape = 'u8[512]{0}', space=vmem, size = 0x400, scoped, tag = 'input window, operand 9, single buffered']
    #allocation8 [shape = 'u8[8192]{0}', space=vmem, size = 0x2000, scoped, tag = 'output window, operand 0, single buffered']
    %17 = vsyncpa [#allocation3], 0
    %18 = vsyncpa [#allocation6], 0
    %19 = vsyncpa [#allocation4], 0
    // Predicated region
    $region2: #{tpu_custom_call.1} parent=1 // pred_check
      _
    $region3: #{tpu_custom_call.1} parent=1 // pred_check_branch
      %21 = sbr.rel (0) target = $region5
    $region4: #{tpu_custom_call.1} parent=1 // pred_region
      %s23 = ssub.s32 256, 256
      %24 = vsyncadd [#allocation3], %s23
      %s25 = sshll.u32 [#allocation2], 4
      %s26 = int_to_ptr.vmem [resolvable:$true] %s25
      %31 = dma.hbm_to_vmem [thread:$0]  %s0, 256, %s26, [#allocation3], 128, 128, 8
    $region5: #{tpu_custom_call.1} parent=1 // pred_fallthru
      _
    // Predicated region
    $region6: #{tpu_custom_call.1} parent=1 // pred_check
      _
    $region7: #{tpu_custom_call.1} parent=1 // pred_check_branch
      %33 = sbr.rel (0) target = $region9
    $region8: #{tpu_custom_call.1} parent=1 // pred_region
      _
    $region9: #{tpu_custom_call.1} parent=1 // pred_fallthru
      _
    // Predicated region
    $region10: #{tpu_custom_call.1} parent=1 // pred_check
      _
    $region11: #{tpu_custom_call.1} parent=1 // pred_check_branch
      %35 = sbr.rel (0) target = $region13
    $region12: #{tpu_custom_call.1} parent=1 // pred_region
      _
    $region13: #{tpu_custom_call.1} parent=1 // pred_fallthru
      _
    // Predicated region
    $region14: #{tpu_custom_call.1} parent=1 // pred_check
      _
    $region15: #{tpu_custom_call.1} parent=1 // pred_check_branch
      %37 = sbr.rel (0) target = $region17
    $region16: #{tpu_custom_call.1} parent=1 // pred_region
      _
    $region17: #{tpu_custom_call.1} parent=1 // pred_fallthru
      _
    // Predicated region
    $region18: #{tpu_custom_call.1} parent=1 // pred_check
      _
    $region19: #{tpu_custom_call.1} parent=1 // pred_check_branch
      %39 = sbr.rel (0) target = $region21
    $region20: #{tpu_custom_call.1} parent=1 // pred_region
      _
    $region21: #{tpu_custom_call.1} parent=1 // pred_fallthru
      _
    // Predicated region
    $region22: #{tpu_custom_call.1} parent=1 // pred_check
      _
    $region23: #{tpu_custom_call.1} parent=1 // pred_check_branch
      %41 = sbr.rel (0) target = $region25
    $region24: #{tpu_custom_call.1} parent=1 // pred_region
      _
    $region25: #{tpu_custom_call.1} parent=1 // pred_fallthru
      _
    // Predicated region
    $region26: #{tpu_custom_call.1} parent=1 // pred_check
      _
    $region27: #{tpu_custom_call.1} parent=1 // pred_check_branch
      %43 = sbr.rel (0) target = $region29
    $region28: #{tpu_custom_call.1} parent=1 // pred_region
      _
    $region29: #{tpu_custom_call.1} parent=1 // pred_fallthru
      _
    // Predicated region
    $region30: #{tpu_custom_call.1} parent=1 // pred_check
      _
    $region31: #{tpu_custom_call.1} parent=1 // pred_check_branch
      %45 = sbr.rel (0) target = $region33
    $region32: #{tpu_custom_call.1} parent=1 // pred_region
      %s47 = ssub.s32 16, 16
      %48 = vsyncadd [#allocation6], %s47
      %s50 = sshll.u32 [#allocation5], 4
      %s51 = int_to_ptr.vmem [resolvable:$true] %s50
      %53 = dma.hbm_to_vmem [thread:$0]  %s7, 16, %s51, [#allocation6]
    $region33: #{tpu_custom_call.1} parent=1 // pred_fallthru
      _
    // Predicated region
    $region34: #{tpu_custom_call.1} parent=1 // pred_check
      _
    $region35: #{tpu_custom_call.1} parent=1 // pred_check_branch
      %55 = sbr.rel (0) target = $region37
    $region36: #{tpu_custom_call.1} parent=1 // pred_region
      _
    $region37: #{tpu_custom_call.1} parent=1 // pred_fallthru
      _
    // Predicated region
    $region38: #{tpu_custom_call.1} parent=1 // pred_check
      _
    $region39: #{tpu_custom_call.1} parent=1 // pred_check_branch
      %57 = sbr.rel (0) target = $region41
    $region40: #{tpu_custom_call.1} parent=1 // pred_region
      %s59 = ssub.s32 16, 16
      %60 = vsyncadd [#allocation6], %s59
      %s62 = sshll.u32 [#allocation7], 4
      %s63 = int_to_ptr.vmem [resolvable:$true] %s62
      %65 = dma.hbm_to_vmem [thread:$0]  %s9, 16, %s63, [#allocation6]
    $region41: #{tpu_custom_call.1} parent=1 // pred_fallthru
      _
    // Predicated region
    $region42: #{tpu_custom_call.1} parent=1 // pred_check
      _
    $region43: #{tpu_custom_call.1} parent=1 // pred_check_branch
      %67 = sbr.rel (0) target = $region45
    $region44: #{tpu_custom_call.1} parent=1 // pred_region
      _
    $region45: #{tpu_custom_call.1} parent=1 // pred_fallthru
      _
    // Predicated region
    $region46: #{tpu_custom_call.1} parent=1 // pred_check
      _
    $region47: #{tpu_custom_call.1} parent=1 // pred_check_branch
      %69 = sbr.rel (0) target = $region49
    $region48: #{tpu_custom_call.1} parent=1 // pred_region
      _
    $region49: #{tpu_custom_call.1} parent=1 // pred_fallthru
      _
    // Predicated region
    $region50: #{tpu_custom_call.1} parent=1 // pred_check
      _
    $region51: #{tpu_custom_call.1} parent=1 // pred_check_branch
      %71 = sbr.rel (0) target = $region53
    $region52: #{tpu_custom_call.1} parent=1 // pred_region
      %72 = dma.done [#allocation3], 256
    $region53: #{tpu_custom_call.1} parent=1 // pred_fallthru
      _
    // Predicated region
    $region54: #{tpu_custom_call.1} parent=1 // pred_check
      _
    $region55: #{tpu_custom_call.1} parent=1 // pred_check_branch
      %74 = sbr.rel (0) target = $region57
    $region56: #{tpu_custom_call.1} parent=1 // pred_region
      %75 = dma.done [#allocation6], 16
    $region57: #{tpu_custom_call.1} parent=1 // pred_fallthru
      _
    // Predicated region
    $region58: #{tpu_custom_call.1} parent=1 // pred_check
      _
    $region59: #{tpu_custom_call.1} parent=1 // pred_check_branch
      %77 = sbr.rel (0) target = $region61
    $region60: #{tpu_custom_call.1} parent=1 // pred_region
      %78 = dma.done [#allocation6], 16
    $region61: #{tpu_custom_call.1} parent=1 // pred_fallthru
      _
    %v79 = vld [vmem:[#allocation2] sm:$0xff]
    %v80 = vld [vmem:[#allocation2 + $0x8] sm:$0xff]
    %v81 = vld [vmem:[%s2] sm:$0x1]
    %v82 = vld [vmem:[%s3] sm:$0x1]
    %vm83 = vcmask 261120
    %v84 = vsel %vm83, %v79, 0.0
    %85 = vadd.xlane.f32.xlu0 %v84
    %v86 = vpop.xlane.xlu0 %85
    %v87 = vsel %vm83, %v80, 0.0
    %88 = vadd.xlane.f32.xlu0 %v87
    %v89 = vpop.xlane.xlu0 %88
    %v90 = vrcp.pop 32.0
    %v91 = vmul.f32 %v86, %v90
    %v92 = vmul.f32 %v89, %v90
    %v93 = vsub.f32 %v79, %v91
    %v94 = vsub.f32 %v80, %v92
    %v95 = vmul.f32 %v93, %v93
    %v96 = vmul.f32 %v94, %v94
    %v97 = vsel %vm83, %v95, 0.0
    %98 = vadd.xlane.f32.xlu0 %v97
    %v99 = vpop.xlane.xlu0 %98
    %v100 = vsel %vm83, %v96, 0.0
    %101 = vadd.xlane.f32.xlu0 %v100
    %v102 = vpop.xlane.xlu0 %101
    %v103 = vmul.f32 %v99, %v90
    %v104 = vmul.f32 %v102, %v90
    %v105 = vadd.f32 %v103, 1e-05
    %v106 = vadd.f32 %v104, 1e-05
    %v107 = vrsqrt.pop %v105
    %v108 = vrsqrt.pop %v106
    %v109 = vmul.f32 %v93, %v107
    %v110 = vmul.f32 %v94, %v108
    %v112 = vlaneseq
    %v113 = vshrl.u32 %v112, 7
    %v114 = vsub.s32 0, %v113
    %v115 = vrot.slane %v81, %v114
    %v117 = vmul.f32 %v109, %v115
    %v118 = vmul.f32 %v110, %v115
    %v120 = vlaneseq
    %v121 = vshrl.u32 %v120, 7
    %v122 = vsub.s32 0, %v121
    %v123 = vrot.slane %v82, %v122
    %v125 = vadd.f32 %v117, %v123
    %v126 = vadd.f32 %v118, %v123
    %v127 = vld [vmem:[%s4] sm:$0xff]
    %v128 = vld [vmem:[%s4 + $0x8] sm:$0xff]
    %v129 = vld [vmem:[%s4 + $0x10] sm:$0xff]
    %v130 = vld [vmem:[%s4 + $0x18] sm:$0xff]
    %v131 = vld [vmem:[%s5] sm:$0x1]
    %v133 = vlaneseq
    %v134 = vshrl.u32 %v133, 7
    %v135 = vsub.s32 0, %v134
    %v136 = vrot.slane %v131, %v135
    %v139 = vsel %vm83, %v125, 0
    %v142 = vsel %vm83, %v126, 0
    %144 = vmatprep.subr.mxu0 0.0
    %145 = vmatpush1.msra.mxu0 %v127
    %146 = vmatprep.subr.mxu0 0.0
    %147 = vmatpush1.msra.mxu0 %v128
    %148 = vmatprep.subr.mxu0 0.0
    %149 = vmatpush1.msra.mxu0 %v129
    %150 = vmatprep.subr.mxu0 0.0
    %151 = vmatpush1.msra.mxu0 %v130
    %152 = vmatprep.subr.mxu0 0.0
    %153 = vmatpush1.msra.mxu0 0.0
    %154 = vmatprep.subr.mxu0 0.0
    %155 = vmatpush1.msra.mxu0 0.0
    %156 = vmatprep.subr.mxu0 0.0
    %157 = vmatpush1.msra.mxu0 0.0
    %158 = vmatprep.subr.mxu0 0.0
    %159 = vmatpush1.msra.mxu0 0.0
    %160 = vmatprep.subr.mxu0 0.0
    %161 = vmatpush1.msra.mxu0 0.0
    %162 = vmatprep.subr.mxu0 0.0
    %163 = vmatpush1.msra.mxu0 0.0
    %164 = vmatprep.subr.mxu0 0.0
    %165 = vmatpush1.msra.mxu0 0.0
    %166 = vmatprep.subr.mxu0 0.0
    %167 = vmatpush1.msra.mxu0 0.0
    %168 = vmatprep.subr.mxu0 0.0
    %169 = vmatpush1.msra.mxu0 0.0
    %170 = vmatprep.subr.mxu0 0.0
    %171 = vmatpush1.msra.mxu0 0.0
    %172 = vmatprep.subr.mxu0 0.0
    %173 = vmatpush1.msra.mxu0 0.0
    %174 = vmatprep.subr.mxu0 0.0
    %175 = vmatpush1.msra.mxu0 0.0
    %176 = vmatprep.subr.mxu0 0.0
    %177 = vmatpush1.msra.mxu0 0.0
    %178 = vmatprep.subr.mxu0 0.0
    %179 = vmatpush1.msra.mxu0 0.0
    %180 = vmatprep.subr.mxu0 0.0
    %181 = vmatpush1.msra.mxu0 0.0
    %182 = vmatprep.subr.mxu0 0.0
    %183 = vmatpush1.msra.mxu0 0.0
    %184 = vmatprep.subr.mxu0 0.0
    %185 = vmatpush1.msra.mxu0 0.0
    %186 = vmatprep.subr.mxu0 0.0
    %187 = vmatpush1.msra.mxu0 0.0
    %188 = vmatprep.subr.mxu0 0.0
    %189 = vmatpush1.msra.mxu0 0.0
    %190 = vmatprep.subr.mxu0 0.0
    %191 = vmatpush1.msra.mxu0 0.0
    %192 = vmatprep.subr.mxu0 0.0
    %193 = vmatpush1.msra.mxu0 0.0
    %194 = vmatprep.subr.mxu0 0.0
    %195 = vmatpush1.msra.mxu0 0.0
    %196 = vmatprep.subr.mxu0 0.0
    %197 = vmatpush1.msra.mxu0 0.0
    %198 = vmatprep.subr.mxu0 0.0
    %199 = vmatpush1.msra.mxu0 0.0
    %200 = vmatprep.subr.mxu0 0.0
    %201 = vmatpush1.msra.mxu0 0.0
    %202 = vmatprep.subr.mxu0 0.0
    %203 = vmatpush1.msra.mxu0 0.0
    %204 = vmatprep.subr.mxu0 0.0
    %205 = vmatpush1.msra.mxu0 0.0
    %206 = vmatprep.subr.mxu0 0.0
    %207 = vmatpush1.msra.mxu0 0.0
    %208 = vmatprep.mubr.f32.mxu0 0.0
    %209 = vmatmul.mubr.f32.gmra.mrb[0].mxu0 %v139
    %v210 = vpop.f32.mrb[0].mxu0
    %v211 = vadd.f32 %v136, %v210
    %v212 = vpop.f32.mrb[0].mxu0
    %213 = vmatprep.mubr.f32.mxu0 0.0
    %214 = vmatmul.mubr.f32.gmra.mrb[0].mxu0 %v142
    %v215 = vpop.f32.mrb[0].mxu0
    %v216 = vadd.f32 %v136, %v215
    %v217 = vpop.f32.mrb[0].mxu0
    %218 = vdwg.mxu0
    %v219 = vmul.f32 %v211, 0.35355338
    %v220 = vmul.f32 %v216, 0.35355338
    %v221 = vld [vmem:[%s1] sm:$0x1]
    %v222 = vld [vmem:[%s1 + $0x1] sm:$0x1]
    %vm223 = vcmp.eq.f32.partialorder %v221, 0.0
    %vm224 = vcmp.eq.f32.partialorder %v222, 0.0
    %v225 = vsel %vm223, -1e+09, 0.0
    %v226 = vsel %vm224, -1e+09, 0.0
    %v228 = vlaneseq
    %v229 = vshrl.u32 %v228, 7
    %v230 = vsub.s32 0, %v229
    %v231 = vrot.slane %v225, %v230
    %234 = vrot.lane.b32.xlu0 %v211, 96
    %v235 = vpop.permute.xlu0 %234
    %vm236 = vcmask 64512
    %v238 = vsel %vm236, %v219, 0
    %v240 = vsel %vm236, %v235, 0
    %242 = vmatprep.subr.mxu0 0.0
    %243 = vmatpush1.xpose.msra.mxu0 %v240
    %244 = vmatprep.subr.mxu0 0.0
    %245 = vmatpush1.xpose.msra.mxu0 0.0
    %246 = vmatprep.subr.mxu0 0.0
    %247 = vmatpush1.xpose.msra.mxu0 0.0
    %248 = vmatprep.subr.mxu0 0.0
    %249 = vmatpush1.xpose.msra.mxu0 0.0
    %250 = vmatprep.subr.mxu0 0.0
    %251 = vmatpush1.xpose.msra.mxu0 0.0
    %252 = vmatprep.subr.mxu0 0.0
    %253 = vmatpush1.xpose.msra.mxu0 0.0
    %254 = vmatprep.subr.mxu0 0.0
    %255 = vmatpush1.xpose.msra.mxu0 0.0
    %256 = vmatprep.subr.mxu0 0.0
    %257 = vmatpush1.xpose.msra.mxu0 0.0
    %258 = vmatprep.subr.mxu0 0.0
    %259 = vmatpush1.xpose.msra.mxu0 0.0
    %260 = vmatprep.subr.mxu0 0.0
    %261 = vmatpush1.xpose.msra.mxu0 0.0
    %262 = vmatprep.subr.mxu0 0.0
    %263 = vmatpush1.xpose.msra.mxu0 0.0
    %264 = vmatprep.subr.mxu0 0.0
    %265 = vmatpush1.xpose.msra.mxu0 0.0
    %266 = vmatprep.subr.mxu0 0.0
    %267 = vmatpush1.xpose.msra.mxu0 0.0
    %268 = vmatprep.subr.mxu0 0.0
    %269 = vmatpush1.xpose.msra.mxu0 0.0
    %270 = vmatprep.subr.mxu0 0.0
    %271 = vmatpush1.xpose.msra.mxu0 0.0
    %272 = vmatprep.subr.mxu0 0.0
    %273 = vmatpush1.xpose.msra.mxu0 0.0
    %274 = vmatprep.subr.mxu0 0.0
    %275 = vmatpush1.xpose.msra.mxu0 0.0
    %276 = vmatprep.subr.mxu0 0.0
    %277 = vmatpush1.xpose.msra.mxu0 0.0
    %278 = vmatprep.subr.mxu0 0.0
    %279 = vmatpush1.xpose.msra.mxu0 0.0
    %280 = vmatprep.subr.mxu0 0.0
    %281 = vmatpush1.xpose.msra.mxu0 0.0
    %282 = vmatprep.subr.mxu0 0.0
    %283 = vmatpush1.xpose.msra.mxu0 0.0
    %284 = vmatprep.subr.mxu0 0.0
    %285 = vmatpush1.xpose.msra.mxu0 0.0
    %286 = vmatprep.subr.mxu0 0.0
    %287 = vmatpush1.xpose.msra.mxu0 0.0
    %288 = vmatprep.subr.mxu0 0.0
    %289 = vmatpush1.xpose.msra.mxu0 0.0
    %290 = vmatprep.subr.mxu0 0.0
    %291 = vmatpush1.xpose.msra.mxu0 0.0
    %292 = vmatprep.subr.mxu0 0.0
    %293 = vmatpush1.xpose.msra.mxu0 0.0
    %294 = vmatprep.subr.mxu0 0.0
    %295 = vmatpush1.xpose.msra.mxu0 0.0
    %296 = vmatprep.subr.mxu0 0.0
    %297 = vmatpush1.xpose.msra.mxu0 0.0
    %298 = vmatprep.subr.mxu0 0.0
    %299 = vmatpush1.xpose.msra.mxu0 0.0
    %300 = vmatprep.subr.mxu0 0.0
    %301 = vmatpush1.xpose.msra.mxu0 0.0
    %302 = vmatprep.subr.mxu0 0.0
    %303 = vmatpush1.xpose.msra.mxu0 0.0
    %304 = vmatprep.subr.mxu0 0.0
    %305 = vmatpush1.xpose.msra.mxu0 0.0
    %306 = vmatprep.mubr.f32.mxu0 0.0
    %307 = vmatmul.mubr.f32.gmra.mrb[0].mxu0 %v238
    %v308 = vpop.f32.mrb[0].mxu0
    %v309 = vadd.f32 %v231, %v308
    %v310 = vpop.f32.mrb[0].mxu0
    %311 = vdwg.mxu0
    %312 = vrot.lane.b32.xlu0 %v219, 120
    %v313 = vpop.permute.xlu0 %312
    %314 = vrot.lane.b32.xlu0 %v211, 88
    %v315 = vpop.permute.xlu0 %314
    %v316 = vsel %vm236, %v313, 0
    %v318 = vsel %vm236, %v315, 0
    %320 = vmatprep.subr.mxu0 0.0
    %321 = vmatpush1.xpose.msra.mxu0 %v318
    %322 = vmatprep.subr.mxu0 0.0
    %323 = vmatpush1.xpose.msra.mxu0 0.0
    %324 = vmatprep.subr.mxu0 0.0
    %325 = vmatpush1.xpose.msra.mxu0 0.0
    %326 = vmatprep.subr.mxu0 0.0
    %327 = vmatpush1.xpose.msra.mxu0 0.0
    %328 = vmatprep.subr.mxu0 0.0
    %329 = vmatpush1.xpose.msra.mxu0 0.0
    %330 = vmatprep.subr.mxu0 0.0
    %331 = vmatpush1.xpose.msra.mxu0 0.0
    %332 = vmatprep.subr.mxu0 0.0
    %333 = vmatpush1.xpose.msra.mxu0 0.0
    %334 = vmatprep.subr.mxu0 0.0
    %335 = vmatpush1.xpose.msra.mxu0 0.0
    %336 = vmatprep.subr.mxu0 0.0
    %337 = vmatpush1.xpose.msra.mxu0 0.0
    %338 = vmatprep.subr.mxu0 0.0
    %339 = vmatpush1.xpose.msra.mxu0 0.0
    %340 = vmatprep.subr.mxu0 0.0
    %341 = vmatpush1.xpose.msra.mxu0 0.0
    %342 = vmatprep.subr.mxu0 0.0
    %343 = vmatpush1.xpose.msra.mxu0 0.0
    %344 = vmatprep.subr.mxu0 0.0
    %345 = vmatpush1.xpose.msra.mxu0 0.0
    %346 = vmatprep.subr.mxu0 0.0
    %347 = vmatpush1.xpose.msra.mxu0 0.0
    %348 = vmatprep.subr.mxu0 0.0
    %349 = vmatpush1.xpose.msra.mxu0 0.0
    %350 = vmatprep.subr.mxu0 0.0
    %351 = vmatpush1.xpose.msra.mxu0 0.0
    %352 = vmatprep.subr.mxu0 0.0
    %353 = vmatpush1.xpose.msra.mxu0 0.0
    %354 = vmatprep.subr.mxu0 0.0
    %355 = vmatpush1.xpose.msra.mxu0 0.0
    %356 = vmatprep.subr.mxu0 0.0
    %357 = vmatpush1.xpose.msra.mxu0 0.0
    %358 = vmatprep.subr.mxu0 0.0
    %359 = vmatpush1.xpose.msra.mxu0 0.0
    %360 = vmatprep.subr.mxu0 0.0
    %361 = vmatpush1.xpose.msra.mxu0 0.0
    %362 = vmatprep.subr.mxu0 0.0
    %363 = vmatpush1.xpose.msra.mxu0 0.0
    %364 = vmatprep.subr.mxu0 0.0
    %365 = vmatpush1.xpose.msra.mxu0 0.0
    %366 = vmatprep.subr.mxu0 0.0
    %367 = vmatpush1.xpose.msra.mxu0 0.0
    %368 = vmatprep.subr.mxu0 0.0
    %369 = vmatpush1.xpose.msra.mxu0 0.0
    %370 = vmatprep.subr.mxu0 0.0
    %371 = vmatpush1.xpose.msra.mxu0 0.0
    %372 = vmatprep.subr.mxu0 0.0
    %373 = vmatpush1.xpose.msra.mxu0 0.0
    %374 = vmatprep.subr.mxu0 0.0
    %375 = vmatpush1.xpose.msra.mxu0 0.0
    %376 = vmatprep.subr.mxu0 0.0
    %377 = vmatpush1.xpose.msra.mxu0 0.0
    %378 = vmatprep.subr.mxu0 0.0
    %379 = vmatpush1.xpose.msra.mxu0 0.0
    %380 = vmatprep.subr.mxu0 0.0
    %381 = vmatpush1.xpose.msra.mxu0 0.0
    %382 = vmatprep.subr.mxu0 0.0
    %383 = vmatpush1.xpose.msra.mxu0 0.0
    %384 = vmatprep.mubr.f32.mxu0 0.0
    %385 = vmatmul.mubr.f32.gmra.mrb[0].mxu0 %v316
    %v386 = vpop.f32.mrb[0].mxu0
    %v387 = vadd.f32 %v231, %v386
    %v388 = vpop.f32.mrb[0].mxu0
    %389 = vdwg.mxu0
    %390 = vrot.lane.b32.xlu0 %v219, 112
    %v391 = vpop.permute.xlu0 %390
    %392 = vrot.lane.b32.xlu0 %v211, 80
    %v393 = vpop.permute.xlu0 %392
    %v394 = vsel %vm236, %v391, 0
    %v396 = vsel %vm236, %v393, 0
    %398 = vmatprep.subr.mxu0 0.0
    %399 = vmatpush1.xpose.msra.mxu0 %v396
    %400 = vmatprep.subr.mxu0 0.0
    %401 = vmatpush1.xpose.msra.mxu0 0.0
    %402 = vmatprep.subr.mxu0 0.0
    %403 = vmatpush1.xpose.msra.mxu0 0.0
    %404 = vmatprep.subr.mxu0 0.0
    %405 = vmatpush1.xpose.msra.mxu0 0.0
    %406 = vmatprep.subr.mxu0 0.0
    %407 = vmatpush1.xpose.msra.mxu0 0.0
    %408 = vmatprep.subr.mxu0 0.0
    %409 = vmatpush1.xpose.msra.mxu0 0.0
    %410 = vmatprep.subr.mxu0 0.0
    %411 = vmatpush1.xpose.msra.mxu0 0.0
    %412 = vmatprep.subr.mxu0 0.0
    %413 = vmatpush1.xpose.msra.mxu0 0.0
    %414 = vmatprep.subr.mxu0 0.0
    %415 = vmatpush1.xpose.msra.mxu0 0.0
    %416 = vmatprep.subr.mxu0 0.0
    %417 = vmatpush1.xpose.msra.mxu0 0.0
    %418 = vmatprep.subr.mxu0 0.0
    %419 = vmatpush1.xpose.msra.mxu0 0.0
    %420 = vmatprep.subr.mxu0 0.0
    %421 = vmatpush1.xpose.msra.mxu0 0.0
    %422 = vmatprep.subr.mxu0 0.0
    %423 = vmatpush1.xpose.msra.mxu0 0.0
    %424 = vmatprep.subr.mxu0 0.0
    %425 = vmatpush1.xpose.msra.mxu0 0.0
    %426 = vmatprep.subr.mxu0 0.0
    %427 = vmatpush1.xpose.msra.mxu0 0.0
    %428 = vmatprep.subr.mxu0 0.0
    %429 = vmatpush1.xpose.msra.mxu0 0.0
    %430 = vmatprep.subr.mxu0 0.0
    %431 = vmatpush1.xpose.msra.mxu0 0.0
    %432 = vmatprep.subr.mxu0 0.0
    %433 = vmatpush1.xpose.msra.mxu0 0.0
    %434 = vmatprep.subr.mxu0 0.0
    %435 = vmatpush1.xpose.msra.mxu0 0.0
    %436 = vmatprep.subr.mxu0 0.0
    %437 = vmatpush1.xpose.msra.mxu0 0.0
    %438 = vmatprep.subr.mxu0 0.0
    %439 = vmatpush1.xpose.msra.mxu0 0.0
    %440 = vmatprep.subr.mxu0 0.0
    %441 = vmatpush1.xpose.msra.mxu0 0.0
    %442 = vmatprep.subr.mxu0 0.0
    %443 = vmatpush1.xpose.msra.mxu0 0.0
    %444 = vmatprep.subr.mxu0 0.0
    %445 = vmatpush1.xpose.msra.mxu0 0.0
    %446 = vmatprep.subr.mxu0 0.0
    %447 = vmatpush1.xpose.msra.mxu0 0.0
    %448 = vmatprep.subr.mxu0 0.0
    %449 = vmatpush1.xpose.msra.mxu0 0.0
    %450 = vmatprep.subr.mxu0 0.0
    %451 = vmatpush1.xpose.msra.mxu0 0.0
    %452 = vmatprep.subr.mxu0 0.0
    %453 = vmatpush1.xpose.msra.mxu0 0.0
    %454 = vmatprep.subr.mxu0 0.0
    %455 = vmatpush1.xpose.msra.mxu0 0.0
    %456 = vmatprep.subr.mxu0 0.0
    %457 = vmatpush1.xpose.msra.mxu0 0.0
    %458 = vmatprep.subr.mxu0 0.0
    %459 = vmatpush1.xpose.msra.mxu0 0.0
    %460 = vmatprep.subr.mxu0 0.0
    %461 = vmatpush1.xpose.msra.mxu0 0.0
    %462 = vmatprep.mubr.f32.mxu0 0.0
    %463 = vmatmul.mubr.f32.gmra.mrb[0].mxu0 %v394
    %v464 = vpop.f32.mrb[0].mxu0
    %v465 = vadd.f32 %v231, %v464
    %v466 = vpop.f32.mrb[0].mxu0
    %467 = vdwg.mxu0
    %468 = vrot.lane.b32.xlu0 %v219, 104
    %v469 = vpop.permute.xlu0 %468
    %470 = vrot.lane.b32.xlu0 %v211, 72
    %v471 = vpop.permute.xlu0 %470
    %v472 = vsel %vm236, %v469, 0
    %v474 = vsel %vm236, %v471, 0
    %476 = vmatprep.subr.mxu0 0.0
    %477 = vmatpush1.xpose.msra.mxu0 %v474
    %478 = vmatprep.subr.mxu0 0.0
    %479 = vmatpush1.xpose.msra.mxu0 0.0
    %480 = vmatprep.subr.mxu0 0.0
    %481 = vmatpush1.xpose.msra.mxu0 0.0
    %482 = vmatprep.subr.mxu0 0.0
    %483 = vmatpush1.xpose.msra.mxu0 0.0
    %484 = vmatprep.subr.mxu0 0.0
    %485 = vmatpush1.xpose.msra.mxu0 0.0
    %486 = vmatprep.subr.mxu0 0.0
    %487 = vmatpush1.xpose.msra.mxu0 0.0
    %488 = vmatprep.subr.mxu0 0.0
    %489 = vmatpush1.xpose.msra.mxu0 0.0
    %490 = vmatprep.subr.mxu0 0.0
    %491 = vmatpush1.xpose.msra.mxu0 0.0
    %492 = vmatprep.subr.mxu0 0.0
    %493 = vmatpush1.xpose.msra.mxu0 0.0
    %494 = vmatprep.subr.mxu0 0.0
    %495 = vmatpush1.xpose.msra.mxu0 0.0
    %496 = vmatprep.subr.mxu0 0.0
    %497 = vmatpush1.xpose.msra.mxu0 0.0
    %498 = vmatprep.subr.mxu0 0.0
    %499 = vmatpush1.xpose.msra.mxu0 0.0
    %500 = vmatprep.subr.mxu0 0.0
    %501 = vmatpush1.xpose.msra.mxu0 0.0
    %502 = vmatprep.subr.mxu0 0.0
    %503 = vmatpush1.xpose.msra.mxu0 0.0
    %504 = vmatprep.subr.mxu0 0.0
    %505 = vmatpush1.xpose.msra.mxu0 0.0
    %506 = vmatprep.subr.mxu0 0.0
    %507 = vmatpush1.xpose.msra.mxu0 0.0
    %508 = vmatprep.subr.mxu0 0.0
    %509 = vmatpush1.xpose.msra.mxu0 0.0
    %510 = vmatprep.subr.mxu0 0.0
    %511 = vmatpush1.xpose.msra.mxu0 0.0
    %512 = vmatprep.subr.mxu0 0.0
    %513 = vmatpush1.xpose.msra.mxu0 0.0
    %514 = vmatprep.subr.mxu0 0.0
    %515 = vmatpush1.xpose.msra.mxu0 0.0
    %516 = vmatprep.subr.mxu0 0.0
    %517 = vmatpush1.xpose.msra.mxu0 0.0
    %518 = vmatprep.subr.mxu0 0.0
    %519 = vmatpush1.xpose.msra.mxu0 0.0
    %520 = vmatprep.subr.mxu0 0.0
    %521 = vmatpush1.xpose.msra.mxu0 0.0
    %522 = vmatprep.subr.mxu0 0.0
    %523 = vmatpush1.xpose.msra.mxu0 0.0
    %524 = vmatprep.subr.mxu0 0.0
    %525 = vmatpush1.xpose.msra.mxu0 0.0
    %526 = vmatprep.subr.mxu0 0.0
    %527 = vmatpush1.xpose.msra.mxu0 0.0
    %528 = vmatprep.subr.mxu0 0.0
    %529 = vmatpush1.xpose.msra.mxu0 0.0
    %530 = vmatprep.subr.mxu0 0.0
    %531 = vmatpush1.xpose.msra.mxu0 0.0
    %532 = vmatprep.subr.mxu0 0.0
    %533 = vmatpush1.xpose.msra.mxu0 0.0
    %534 = vmatprep.subr.mxu0 0.0
    %535 = vmatpush1.xpose.msra.mxu0 0.0
    %536 = vmatprep.subr.mxu0 0.0
    %537 = vmatpush1.xpose.msra.mxu0 0.0
    %538 = vmatprep.subr.mxu0 0.0
    %539 = vmatpush1.xpose.msra.mxu0 0.0
    %540 = vmatprep.mubr.f32.mxu0 0.0
    %541 = vmatmul.mubr.f32.gmra.mrb[0].mxu0 %v472
    %v542 = vpop.f32.mrb[0].mxu0
    %v543 = vadd.f32 %v231, %v542
    %v544 = vpop.f32.mrb[0].mxu0
    %545 = vdwg.mxu0
    %v547 = vlaneseq
    %v548 = vshrl.u32 %v547, 7
    %v549 = vsub.s32 0, %v548
    %v550 = vrot.slane %v226, %v549
    %553 = vrot.lane.b32.xlu0 %v216, 96
    %v554 = vpop.permute.xlu0 %553
    %v556 = vsel %vm236, %v220, 0
    %v558 = vsel %vm236, %v554, 0
    %560 = vmatprep.subr.mxu0 0.0
    %561 = vmatpush1.xpose.msra.mxu0 %v558
    %562 = vmatprep.subr.mxu0 0.0
    %563 = vmatpush1.xpose.msra.mxu0 0.0
    %564 = vmatprep.subr.mxu0 0.0
    %565 = vmatpush1.xpose.msra.mxu0 0.0
    %566 = vmatprep.subr.mxu0 0.0
    %567 = vmatpush1.xpose.msra.mxu0 0.0
    %568 = vmatprep.subr.mxu0 0.0
    %569 = vmatpush1.xpose.msra.mxu0 0.0
    %570 = vmatprep.subr.mxu0 0.0
    %571 = vmatpush1.xpose.msra.mxu0 0.0
    %572 = vmatprep.subr.mxu0 0.0
    %573 = vmatpush1.xpose.msra.mxu0 0.0
    %574 = vmatprep.subr.mxu0 0.0
    %575 = vmatpush1.xpose.msra.mxu0 0.0
    %576 = vmatprep.subr.mxu0 0.0
    %577 = vmatpush1.xpose.msra.mxu0 0.0
    %578 = vmatprep.subr.mxu0 0.0
    %579 = vmatpush1.xpose.msra.mxu0 0.0
    %580 = vmatprep.subr.mxu0 0.0
    %581 = vmatpush1.xpose.msra.mxu0 0.0
    %582 = vmatprep.subr.mxu0 0.0
    %583 = vmatpush1.xpose.msra.mxu0 0.0
    %584 = vmatprep.subr.mxu0 0.0
    %585 = vmatpush1.xpose.msra.mxu0 0.0
    %586 = vmatprep.subr.mxu0 0.0
    %587 = vmatpush1.xpose.msra.mxu0 0.0
    %588 = vmatprep.subr.mxu0 0.0
    %589 = vmatpush1.xpose.msra.mxu0 0.0
    %590 = vmatprep.subr.mxu0 0.0
    %591 = vmatpush1.xpose.msra.mxu0 0.0
    %592 = vmatprep.subr.mxu0 0.0
    %593 = vmatpush1.xpose.msra.mxu0 0.0
    %594 = vmatprep.subr.mxu0 0.0
    %595 = vmatpush1.xpose.msra.mxu0 0.0
    %596 = vmatprep.subr.mxu0 0.0
    %597 = vmatpush1.xpose.msra.mxu0 0.0
    %598 = vmatprep.subr.mxu0 0.0
    %599 = vmatpush1.xpose.msra.mxu0 0.0
    %600 = vmatprep.subr.mxu0 0.0
    %601 = vmatpush1.xpose.msra.mxu0 0.0
    %602 = vmatprep.subr.mxu0 0.0
    %603 = vmatpush1.xpose.msra.mxu0 0.0
    %604 = vmatprep.subr.mxu0 0.0
    %605 = vmatpush1.xpose.msra.mxu0 0.0
    %606 = vmatprep.subr.mxu0 0.0
    %607 = vmatpush1.xpose.msra.mxu0 0.0
    %608 = vmatprep.subr.mxu0 0.0
    %609 = vmatpush1.xpose.msra.mxu0 0.0
    %610 = vmatprep.subr.mxu0 0.0
    %611 = vmatpush1.xpose.msra.mxu0 0.0
    %612 = vmatprep.subr.mxu0 0.0
    %613 = vmatpush1.xpose.msra.mxu0 0.0
    %614 = vmatprep.subr.mxu0 0.0
    %615 = vmatpush1.xpose.msra.mxu0 0.0
    %616 = vmatprep.subr.mxu0 0.0
    %617 = vmatpush1.xpose.msra.mxu0 0.0
    %618 = vmatprep.subr.mxu0 0.0
    %619 = vmatpush1.xpose.msra.mxu0 0.0
    %620 = vmatprep.subr.mxu0 0.0
    %621 = vmatpush1.xpose.msra.mxu0 0.0
    %622 = vmatprep.subr.mxu0 0.0
    %623 = vmatpush1.xpose.msra.mxu0 0.0
    %624 = vmatprep.mubr.f32.mxu0 0.0
    %625 = vmatmul.mubr.f32.gmra.mrb[0].mxu0 %v556
    %v626 = vpop.f32.mrb[0].mxu0
    %v627 = vadd.f32 %v550, %v626
    %v628 = vpop.f32.mrb[0].mxu0
    %629 = vdwg.mxu0
    %630 = vrot.lane.b32.xlu0 %v220, 120
    %v631 = vpop.permute.xlu0 %630
    %632 = vrot.lane.b32.xlu0 %v216, 88
    %v633 = vpop.permute.xlu0 %632
    %v634 = vsel %vm236, %v631, 0
    %v636 = vsel %vm236, %v633, 0
    %638 = vmatprep.subr.mxu0 0.0
    %639 = vmatpush1.xpose.msra.mxu0 %v636
    %640 = vmatprep.subr.mxu0 0.0
    %641 = vmatpush1.xpose.msra.mxu0 0.0
    %642 = vmatprep.subr.mxu0 0.0
    %643 = vmatpush1.xpose.msra.mxu0 0.0
    %644 = vmatprep.subr.mxu0 0.0
    %645 = vmatpush1.xpose.msra.mxu0 0.0
    %646 = vmatprep.subr.mxu0 0.0
    %647 = vmatpush1.xpose.msra.mxu0 0.0
    %648 = vmatprep.subr.mxu0 0.0
    %649 = vmatpush1.xpose.msra.mxu0 0.0
    %650 = vmatprep.subr.mxu0 0.0
    %651 = vmatpush1.xpose.msra.mxu0 0.0
    %652 = vmatprep.subr.mxu0 0.0
    %653 = vmatpush1.xpose.msra.mxu0 0.0
    %654 = vmatprep.subr.mxu0 0.0
    %655 = vmatpush1.xpose.msra.mxu0 0.0
    %656 = vmatprep.subr.mxu0 0.0
    %657 = vmatpush1.xpose.msra.mxu0 0.0
    %658 = vmatprep.subr.mxu0 0.0
    %659 = vmatpush1.xpose.msra.mxu0 0.0
    %660 = vmatprep.subr.mxu0 0.0
    %661 = vmatpush1.xpose.msra.mxu0 0.0
    %662 = vmatprep.subr.mxu0 0.0
    %663 = vmatpush1.xpose.msra.mxu0 0.0
    %664 = vmatprep.subr.mxu0 0.0
    %665 = vmatpush1.xpose.msra.mxu0 0.0
    %666 = vmatprep.subr.mxu0 0.0
    %667 = vmatpush1.xpose.msra.mxu0 0.0
    %668 = vmatprep.subr.mxu0 0.0
    %669 = vmatpush1.xpose.msra.mxu0 0.0
    %670 = vmatprep.subr.mxu0 0.0
    %671 = vmatpush1.xpose.msra.mxu0 0.0
    %672 = vmatprep.subr.mxu0 0.0
    %673 = vmatpush1.xpose.msra.mxu0 0.0
    %674 = vmatprep.subr.mxu0 0.0
    %675 = vmatpush1.xpose.msra.mxu0 0.0
    %676 = vmatprep.subr.mxu0 0.0
    %677 = vmatpush1.xpose.msra.mxu0 0.0
    %678 = vmatprep.subr.mxu0 0.0
    %679 = vmatpush1.xpose.msra.mxu0 0.0
    %680 = vmatprep.subr.mxu0 0.0
    %681 = vmatpush1.xpose.msra.mxu0 0.0
    %682 = vmatprep.subr.mxu0 0.0
    %683 = vmatpush1.xpose.msra.mxu0 0.0
    %684 = vmatprep.subr.mxu0 0.0
    %685 = vmatpush1.xpose.msra.mxu0 0.0
    %686 = vmatprep.subr.mxu0 0.0
    %687 = vmatpush1.xpose.msra.mxu0 0.0
    %688 = vmatprep.subr.mxu0 0.0
    %689 = vmatpush1.xpose.msra.mxu0 0.0
    %690 = vmatprep.subr.mxu0 0.0
    %691 = vmatpush1.xpose.msra.mxu0 0.0
    %692 = vmatprep.subr.mxu0 0.0
    %693 = vmatpush1.xpose.msra.mxu0 0.0
    %694 = vmatprep.subr.mxu0 0.0
    %695 = vmatpush1.xpose.msra.mxu0 0.0
    %696 = vmatprep.subr.mxu0 0.0
    %697 = vmatpush1.xpose.msra.mxu0 0.0
    %698 = vmatprep.subr.mxu0 0.0
    %699 = vmatpush1.xpose.msra.mxu0 0.0
    %700 = vmatprep.subr.mxu0 0.0
    %701 = vmatpush1.xpose.msra.mxu0 0.0
    %702 = vmatprep.mubr.f32.mxu0 0.0
    %703 = vmatmul.mubr.f32.gmra.mrb[0].mxu0 %v634
    %v704 = vpop.f32.mrb[0].mxu0
    %v705 = vadd.f32 %v550, %v704
    %v706 = vpop.f32.mrb[0].mxu0
    %707 = vdwg.mxu0
    %708 = vrot.lane.b32.xlu0 %v220, 112
    %v709 = vpop.permute.xlu0 %708
    %710 = vrot.lane.b32.xlu0 %v216, 80
    %v711 = vpop.permute.xlu0 %710
    %v712 = vsel %vm236, %v709, 0
    %v714 = vsel %vm236, %v711, 0
    %716 = vmatprep.subr.mxu0 0.0
    %717 = vmatpush1.xpose.msra.mxu0 %v714
    %718 = vmatprep.subr.mxu0 0.0
    %719 = vmatpush1.xpose.msra.mxu0 0.0
    %720 = vmatprep.subr.mxu0 0.0
    %721 = vmatpush1.xpose.msra.mxu0 0.0
    %722 = vmatprep.subr.mxu0 0.0
    %723 = vmatpush1.xpose.msra.mxu0 0.0
    %724 = vmatprep.subr.mxu0 0.0
    %725 = vmatpush1.xpose.msra.mxu0 0.0
    %726 = vmatprep.subr.mxu0 0.0
    %727 = vmatpush1.xpose.msra.mxu0 0.0
    %728 = vmatprep.subr.mxu0 0.0
    %729 = vmatpush1.xpose.msra.mxu0 0.0
    %730 = vmatprep.subr.mxu0 0.0
    %731 = vmatpush1.xpose.msra.mxu0 0.0
    %732 = vmatprep.subr.mxu0 0.0
    %733 = vmatpush1.xpose.msra.mxu0 0.0
    %734 = vmatprep.subr.mxu0 0.0
    %735 = vmatpush1.xpose.msra.mxu0 0.0
    %736 = vmatprep.subr.mxu0 0.0
    %737 = vmatpush1.xpose.msra.mxu0 0.0
    %738 = vmatprep.subr.mxu0 0.0
    %739 = vmatpush1.xpose.msra.mxu0 0.0
    %740 = vmatprep.subr.mxu0 0.0
    %741 = vmatpush1.xpose.msra.mxu0 0.0
    %742 = vmatprep.subr.mxu0 0.0
    %743 = vmatpush1.xpose.msra.mxu0 0.0
    %744 = vmatprep.subr.mxu0 0.0
    %745 = vmatpush1.xpose.msra.mxu0 0.0
    %746 = vmatprep.subr.mxu0 0.0
    %747 = vmatpush1.xpose.msra.mxu0 0.0
    %748 = vmatprep.subr.mxu0 0.0
    %749 = vmatpush1.xpose.msra.mxu0 0.0
    %750 = vmatprep.subr.mxu0 0.0
    %751 = vmatpush1.xpose.msra.mxu0 0.0
    %752 = vmatprep.subr.mxu0 0.0
    %753 = vmatpush1.xpose.msra.mxu0 0.0
    %754 = vmatprep.subr.mxu0 0.0
    %755 = vmatpush1.xpose.msra.mxu0 0.0
    %756 = vmatprep.subr.mxu0 0.0
    %757 = vmatpush1.xpose.msra.mxu0 0.0
    %758 = vmatprep.subr.mxu0 0.0
    %759 = vmatpush1.xpose.msra.mxu0 0.0
    %760 = vmatprep.subr.mxu0 0.0
    %761 = vmatpush1.xpose.msra.mxu0 0.0
    %762 = vmatprep.subr.mxu0 0.0
    %763 = vmatpush1.xpose.msra.mxu0 0.0
    %764 = vmatprep.subr.mxu0 0.0
    %765 = vmatpush1.xpose.msra.mxu0 0.0
    %766 = vmatprep.subr.mxu0 0.0
    %767 = vmatpush1.xpose.msra.mxu0 0.0
    %768 = vmatprep.subr.mxu0 0.0
    %769 = vmatpush1.xpose.msra.mxu0 0.0
    %770 = vmatprep.subr.mxu0 0.0
    %771 = vmatpush1.xpose.msra.mxu0 0.0
    %772 = vmatprep.subr.mxu0 0.0
    %773 = vmatpush1.xpose.msra.mxu0 0.0
    %774 = vmatprep.subr.mxu0 0.0
    %775 = vmatpush1.xpose.msra.mxu0 0.0
    %776 = vmatprep.subr.mxu0 0.0
    %777 = vmatpush1.xpose.msra.mxu0 0.0
    %778 = vmatprep.subr.mxu0 0.0
    %779 = vmatpush1.xpose.msra.mxu0 0.0
    %780 = vmatprep.mubr.f32.mxu0 0.0
    %781 = vmatmul.mubr.f32.gmra.mrb[0].mxu0 %v712
    %v782 = vpop.f32.mrb[0].mxu0
    %v783 = vadd.f32 %v550, %v782
    %v784 = vpop.f32.mrb[0].mxu0
    %785 = vdwg.mxu0
    %786 = vrot.lane.b32.xlu0 %v220, 104
    %v787 = vpop.permute.xlu0 %786
    %788 = vrot.lane.b32.xlu0 %v216, 72
    %v789 = vpop.permute.xlu0 %788
    %v790 = vsel %vm236, %v787, 0
    %v792 = vsel %vm236, %v789, 0
    %794 = vmatprep.subr.mxu0 0.0
    %795 = vmatpush1.xpose.msra.mxu0 %v792
    %796 = vmatprep.subr.mxu0 0.0
    %797 = vmatpush1.xpose.msra.mxu0 0.0
    %798 = vmatprep.subr.mxu0 0.0
    %799 = vmatpush1.xpose.msra.mxu0 0.0
    %800 = vmatprep.subr.mxu0 0.0
    %801 = vmatpush1.xpose.msra.mxu0 0.0
    %802 = vmatprep.subr.mxu0 0.0
    %803 = vmatpush1.xpose.msra.mxu0 0.0
    %804 = vmatprep.subr.mxu0 0.0
    %805 = vmatpush1.xpose.msra.mxu0 0.0
    %806 = vmatprep.subr.mxu0 0.0
    %807 = vmatpush1.xpose.msra.mxu0 0.0
    %808 = vmatprep.subr.mxu0 0.0
    %809 = vmatpush1.xpose.msra.mxu0 0.0
    %810 = vmatprep.subr.mxu0 0.0
    %811 = vmatpush1.xpose.msra.mxu0 0.0
    %812 = vmatprep.subr.mxu0 0.0
    %813 = vmatpush1.xpose.msra.mxu0 0.0
    %814 = vmatprep.subr.mxu0 0.0
    %815 = vmatpush1.xpose.msra.mxu0 0.0
    %816 = vmatprep.subr.mxu0 0.0
    %817 = vmatpush1.xpose.msra.mxu0 0.0
    %818 = vmatprep.subr.mxu0 0.0
    %819 = vmatpush1.xpose.msra.mxu0 0.0
    %820 = vmatprep.subr.mxu0 0.0
    %821 = vmatpush1.xpose.msra.mxu0 0.0
    %822 = vmatprep.subr.mxu0 0.0
    %823 = vmatpush1.xpose.msra.mxu0 0.0
    %824 = vmatprep.subr.mxu0 0.0
    %825 = vmatpush1.xpose.msra.mxu0 0.0
    %826 = vmatprep.subr.mxu0 0.0
    %827 = vmatpush1.xpose.msra.mxu0 0.0
    %828 = vmatprep.subr.mxu0 0.0
    %829 = vmatpush1.xpose.msra.mxu0 0.0
    %830 = vmatprep.subr.mxu0 0.0
    %831 = vmatpush1.xpose.msra.mxu0 0.0
    %832 = vmatprep.subr.mxu0 0.0
    %833 = vmatpush1.xpose.msra.mxu0 0.0
    %834 = vmatprep.subr.mxu0 0.0
    %835 = vmatpush1.xpose.msra.mxu0 0.0
    %836 = vmatprep.subr.mxu0 0.0
    %837 = vmatpush1.xpose.msra.mxu0 0.0
    %838 = vmatprep.subr.mxu0 0.0
    %839 = vmatpush1.xpose.msra.mxu0 0.0
    %840 = vmatprep.subr.mxu0 0.0
    %841 = vmatpush1.xpose.msra.mxu0 0.0
    %842 = vmatprep.subr.mxu0 0.0
    %843 = vmatpush1.xpose.msra.mxu0 0.0
    %844 = vmatprep.subr.mxu0 0.0
    %845 = vmatpush1.xpose.msra.mxu0 0.0
    %846 = vmatprep.subr.mxu0 0.0
    %847 = vmatpush1.xpose.msra.mxu0 0.0
    %848 = vmatprep.subr.mxu0 0.0
    %849 = vmatpush1.xpose.msra.mxu0 0.0
    %850 = vmatprep.subr.mxu0 0.0
    %851 = vmatpush1.xpose.msra.mxu0 0.0
    %852 = vmatprep.subr.mxu0 0.0
    %853 = vmatpush1.xpose.msra.mxu0 0.0
    %854 = vmatprep.subr.mxu0 0.0
    %855 = vmatpush1.xpose.msra.mxu0 0.0
    %856 = vmatprep.subr.mxu0 0.0
    %857 = vmatpush1.xpose.msra.mxu0 0.0
    %858 = vmatprep.mubr.f32.mxu0 0.0
    %859 = vmatmul.mubr.f32.gmra.mrb[0].mxu0 %v790
    %v860 = vpop.f32.mrb[0].mxu0
    %v861 = vadd.f32 %v550, %v860
    %v862 = vpop.f32.mrb[0].mxu0
    %863 = vdwg.mxu0
    %v864 = vsel %vm236, %v309, -inf
    %865 = vmax.xlane.f32.xlu0 %v864
    %v866 = vpop.xlane.xlu0 %865
    %v867 = vsel %vm236, %v387, -inf
    %868 = vmax.xlane.f32.xlu0 %v867
    %v869 = vpop.xlane.xlu0 %868
    %v870 = vsel %vm236, %v465, -inf
    %871 = vmax.xlane.f32.xlu0 %v870
    %v872 = vpop.xlane.xlu0 %871
    %v873 = vsel %vm236, %v543, -inf
    %874 = vmax.xlane.f32.xlu0 %v873
    %v875 = vpop.xlane.xlu0 %874
    %v876 = vsel %vm236, %v627, -inf
    %877 = vmax.xlane.f32.xlu0 %v876
    %v878 = vpop.xlane.xlu0 %877
    %v879 = vsel %vm236, %v705, -inf
    %880 = vmax.xlane.f32.xlu0 %v879
    %v881 = vpop.xlane.xlu0 %880
    %v882 = vsel %vm236, %v783, -inf
    %883 = vmax.xlane.f32.xlu0 %v882
    %v884 = vpop.xlane.xlu0 %883
    %v885 = vsel %vm236, %v861, -inf
    %886 = vmax.xlane.f32.xlu0 %v885
    %v887 = vpop.xlane.xlu0 %886
    %v888 = vsub.f32 %v309, %v866
    %v889 = vsub.f32 %v387, %v869
    %v890 = vsub.f32 %v465, %v872
    %v891 = vsub.f32 %v543, %v875
    %v892 = vsub.f32 %v627, %v878
    %v893 = vsub.f32 %v705, %v881
    %v894 = vsub.f32 %v783, %v884
    %v895 = vsub.f32 %v861, %v887
    %v896 = vmul.f32 %v888, 1.442695
    %v897 = vpow.pop %v896
    %v898 = vmul.f32 %v889, 1.442695
    %v899 = vpow.pop %v898
    %v900 = vmul.f32 %v890, 1.442695
    %v901 = vpow.pop %v900
    %v902 = vmul.f32 %v891, 1.442695
    %v903 = vpow.pop %v902
    %v904 = vmul.f32 %v892, 1.442695
    %v905 = vpow.pop %v904
    %v906 = vmul.f32 %v893, 1.442695
    %v907 = vpow.pop %v906
    %v908 = vmul.f32 %v894, 1.442695
    %v909 = vpow.pop %v908
    %v910 = vmul.f32 %v895, 1.442695
    %v911 = vpow.pop %v910
    %v912 = vsel %vm236, %v897, 0.0
    %913 = vadd.xlane.f32.xlu0 %v912
    %v914 = vpop.xlane.xlu0 %913
    %v915 = vsel %vm236, %v899, 0.0
    %916 = vadd.xlane.f32.xlu0 %v915
    %v917 = vpop.xlane.xlu0 %916
    %v918 = vsel %vm236, %v901, 0.0
    %919 = vadd.xlane.f32.xlu0 %v918
    %v920 = vpop.xlane.xlu0 %919
    %v921 = vsel %vm236, %v903, 0.0
    %922 = vadd.xlane.f32.xlu0 %v921
    %v923 = vpop.xlane.xlu0 %922
    %v924 = vsel %vm236, %v905, 0.0
    %925 = vadd.xlane.f32.xlu0 %v924
    %v926 = vpop.xlane.xlu0 %925
    %v927 = vsel %vm236, %v907, 0.0
    %928 = vadd.xlane.f32.xlu0 %v927
    %v929 = vpop.xlane.xlu0 %928
    %v930 = vsel %vm236, %v909, 0.0
    %931 = vadd.xlane.f32.xlu0 %v930
    %v932 = vpop.xlane.xlu0 %931
    %v933 = vsel %vm236, %v911, 0.0
    %934 = vadd.xlane.f32.xlu0 %v933
    %v935 = vpop.xlane.xlu0 %934
    %v936 = vrcp.pop %v914
    %v937 = vrcp.pop %v917
    %v938 = vrcp.pop %v920
    %v939 = vrcp.pop %v923
    %v940 = vrcp.pop %v926
    %v941 = vrcp.pop %v929
    %v942 = vrcp.pop %v932
    %v943 = vrcp.pop %v935
    %v944 = vmul.f32 %v897, %v936
    %v945 = vmul.f32 %v899, %v937
    %v946 = vmul.f32 %v901, %v938
    %v947 = vmul.f32 %v903, %v939
    %v948 = vmul.f32 %v905, %v940
    %v949 = vmul.f32 %v907, %v941
    %v950 = vmul.f32 %v909, %v942
    %v951 = vmul.f32 %v911, %v943
    %952 = vrot.lane.b32.xlu0 %v211, 64
    %v953 = vpop.permute.xlu0 %952
    %v956 = vsel %vm236, %v944, 0
    %958 = vmatprep.subr.mxu0 0.0
    %959 = vmatpush1.msra.mxu0 %v953
    %960 = vmatprep.subr.mxu0 0.0
    %961 = vmatpush1.msra.mxu0 0.0
    %962 = vmatprep.subr.mxu0 0.0
    %963 = vmatpush1.msra.mxu0 0.0
    %964 = vmatprep.subr.mxu0 0.0
    %965 = vmatpush1.msra.mxu0 0.0
    %966 = vmatprep.subr.mxu0 0.0
    %967 = vmatpush1.msra.mxu0 0.0
    %968 = vmatprep.subr.mxu0 0.0
    %969 = vmatpush1.msra.mxu0 0.0
    %970 = vmatprep.subr.mxu0 0.0
    %971 = vmatpush1.msra.mxu0 0.0
    %972 = vmatprep.subr.mxu0 0.0
    %973 = vmatpush1.msra.mxu0 0.0
    %974 = vmatprep.subr.mxu0 0.0
    %975 = vmatpush1.msra.mxu0 0.0
    %976 = vmatprep.subr.mxu0 0.0
    %977 = vmatpush1.msra.mxu0 0.0
    %978 = vmatprep.subr.mxu0 0.0
    %979 = vmatpush1.msra.mxu0 0.0
    %980 = vmatprep.subr.mxu0 0.0
    %981 = vmatpush1.msra.mxu0 0.0
    %982 = vmatprep.subr.mxu0 0.0
    %983 = vmatpush1.msra.mxu0 0.0
    %984 = vmatprep.subr.mxu0 0.0
    %985 = vmatpush1.msra.mxu0 0.0
    %986 = vmatprep.subr.mxu0 0.0
    %987 = vmatpush1.msra.mxu0 0.0
    %988 = vmatprep.subr.mxu0 0.0
    %989 = vmatpush1.msra.mxu0 0.0
    %990 = vmatprep.subr.mxu0 0.0
    %991 = vmatpush1.msra.mxu0 0.0
    %992 = vmatprep.subr.mxu0 0.0
    %993 = vmatpush1.msra.mxu0 0.0
    %994 = vmatprep.subr.mxu0 0.0
    %995 = vmatpush1.msra.mxu0 0.0
    %996 = vmatprep.subr.mxu0 0.0
    %997 = vmatpush1.msra.mxu0 0.0
    %998 = vmatprep.subr.mxu0 0.0
    %999 = vmatpush1.msra.mxu0 0.0
    %1000 = vmatprep.subr.mxu0 0.0
    %1001 = vmatpush1.msra.mxu0 0.0
    %1002 = vmatprep.subr.mxu0 0.0
    %1003 = vmatpush1.msra.mxu0 0.0
    %1004 = vmatprep.subr.mxu0 0.0
    %1005 = vmatpush1.msra.mxu0 0.0
    %1006 = vmatprep.subr.mxu0 0.0
    %1007 = vmatpush1.msra.mxu0 0.0
    %1008 = vmatprep.subr.mxu0 0.0
    %1009 = vmatpush1.msra.mxu0 0.0
    %1010 = vmatprep.subr.mxu0 0.0
    %1011 = vmatpush1.msra.mxu0 0.0
    %1012 = vmatprep.subr.mxu0 0.0
    %1013 = vmatpush1.msra.mxu0 0.0
    %1014 = vmatprep.subr.mxu0 0.0
    %1015 = vmatpush1.msra.mxu0 0.0
    %1016 = vmatprep.subr.mxu0 0.0
    %1017 = vmatpush1.msra.mxu0 0.0
    %1018 = vmatprep.subr.mxu0 0.0
    %1019 = vmatpush1.msra.mxu0 0.0
    %1020 = vmatprep.subr.mxu0 0.0
    %1021 = vmatpush1.msra.mxu0 0.0
    %1022 = vmatprep.mubr.f32.mxu0 0.0
    %1023 = vmatmul.mubr.f32.gmra.mrb[0].mxu0 %v956
    %v1024 = vpop.f32.mrb[0].mxu0
    %v1025 = vadd.f32 0.0, %v1024
    %v1026 = vpop.f32.mrb[0].mxu0
    %1027 = vdwg.mxu0
    %1028 = vrot.lane.b32.xlu0 %v211, 56
    %v1029 = vpop.permute.xlu0 %1028
    %v1032 = vsel %vm236, %v945, 0
    %1034 = vmatprep.subr.mxu0 0.0
    %1035 = vmatpush1.msra.mxu0 %v1029
    %1036 = vmatprep.subr.mxu0 0.0
    %1037 = vmatpush1.msra.mxu0 0.0
    %1038 = vmatprep.subr.mxu0 0.0
    %1039 = vmatpush1.msra.mxu0 0.0
    %1040 = vmatprep.subr.mxu0 0.0
    %1041 = vmatpush1.msra.mxu0 0.0
    %1042 = vmatprep.subr.mxu0 0.0
    %1043 = vmatpush1.msra.mxu0 0.0
    %1044 = vmatprep.subr.mxu0 0.0
    %1045 = vmatpush1.msra.mxu0 0.0
    %1046 = vmatprep.subr.mxu0 0.0
    %1047 = vmatpush1.msra.mxu0 0.0
    %1048 = vmatprep.subr.mxu0 0.0
    %1049 = vmatpush1.msra.mxu0 0.0
    %1050 = vmatprep.subr.mxu0 0.0
    %1051 = vmatpush1.msra.mxu0 0.0
    %1052 = vmatprep.subr.mxu0 0.0
    %1053 = vmatpush1.msra.mxu0 0.0
    %1054 = vmatprep.subr.mxu0 0.0
    %1055 = vmatpush1.msra.mxu0 0.0
    %1056 = vmatprep.subr.mxu0 0.0
    %1057 = vmatpush1.msra.mxu0 0.0
    %1058 = vmatprep.subr.mxu0 0.0
    %1059 = vmatpush1.msra.mxu0 0.0
    %1060 = vmatprep.subr.mxu0 0.0
    %1061 = vmatpush1.msra.mxu0 0.0
    %1062 = vmatprep.subr.mxu0 0.0
    %1063 = vmatpush1.msra.mxu0 0.0
    %1064 = vmatprep.subr.mxu0 0.0
    %1065 = vmatpush1.msra.mxu0 0.0
    %1066 = vmatprep.subr.mxu0 0.0
    %1067 = vmatpush1.msra.mxu0 0.0
    %1068 = vmatprep.subr.mxu0 0.0
    %1069 = vmatpush1.msra.mxu0 0.0
    %1070 = vmatprep.subr.mxu0 0.0
    %1071 = vmatpush1.msra.mxu0 0.0
    %1072 = vmatprep.subr.mxu0 0.0
    %1073 = vmatpush1.msra.mxu0 0.0
    %1074 = vmatprep.subr.mxu0 0.0
    %1075 = vmatpush1.msra.mxu0 0.0
    %1076 = vmatprep.subr.mxu0 0.0
    %1077 = vmatpush1.msra.mxu0 0.0
    %1078 = vmatprep.subr.mxu0 0.0
    %1079 = vmatpush1.msra.mxu0 0.0
    %1080 = vmatprep.subr.mxu0 0.0
    %1081 = vmatpush1.msra.mxu0 0.0
    %1082 = vmatprep.subr.mxu0 0.0
    %1083 = vmatpush1.msra.mxu0 0.0
    %1084 = vmatprep.subr.mxu0 0.0
    %1085 = vmatpush1.msra.mxu0 0.0
    %1086 = vmatprep.subr.mxu0 0.0
    %1087 = vmatpush1.msra.mxu0 0.0
    %1088 = vmatprep.subr.mxu0 0.0
    %1089 = vmatpush1.msra.mxu0 0.0
    %1090 = vmatprep.subr.mxu0 0.0
    %1091 = vmatpush1.msra.mxu0 0.0
    %1092 = vmatprep.subr.mxu0 0.0
    %1093 = vmatpush1.msra.mxu0 0.0
    %1094 = vmatprep.subr.mxu0 0.0
    %1095 = vmatpush1.msra.mxu0 0.0
    %1096 = vmatprep.subr.mxu0 0.0
    %1097 = vmatpush1.msra.mxu0 0.0
    %1098 = vmatprep.mubr.f32.mxu0 0.0
    %1099 = vmatmul.mubr.f32.gmra.mrb[0].mxu0 %v1032
    %v1100 = vpop.f32.mrb[0].mxu0
    %v1101 = vadd.f32 0.0, %v1100
    %v1102 = vpop.f32.mrb[0].mxu0
    %1103 = vdwg.mxu0
    %1104 = vrot.lane.b32.xlu0 %v211, 48
    %v1105 = vpop.permute.xlu0 %1104
    %v1108 = vsel %vm236, %v946, 0
    %1110 = vmatprep.subr.mxu0 0.0
    %1111 = vmatpush1.msra.mxu0 %v1105
    %1112 = vmatprep.subr.mxu0 0.0
    %1113 = vmatpush1.msra.mxu0 0.0
    %1114 = vmatprep.subr.mxu0 0.0
    %1115 = vmatpush1.msra.mxu0 0.0
    %1116 = vmatprep.subr.mxu0 0.0
    %1117 = vmatpush1.msra.mxu0 0.0
    %1118 = vmatprep.subr.mxu0 0.0
    %1119 = vmatpush1.msra.mxu0 0.0
    %1120 = vmatprep.subr.mxu0 0.0
    %1121 = vmatpush1.msra.mxu0 0.0
    %1122 = vmatprep.subr.mxu0 0.0
    %1123 = vmatpush1.msra.mxu0 0.0
    %1124 = vmatprep.subr.mxu0 0.0
    %1125 = vmatpush1.msra.mxu0 0.0
    %1126 = vmatprep.subr.mxu0 0.0
    %1127 = vmatpush1.msra.mxu0 0.0
    %1128 = vmatprep.subr.mxu0 0.0
    %1129 = vmatpush1.msra.mxu0 0.0
    %1130 = vmatprep.subr.mxu0 0.0
    %1131 = vmatpush1.msra.mxu0 0.0
    %1132 = vmatprep.subr.mxu0 0.0
    %1133 = vmatpush1.msra.mxu0 0.0
    %1134 = vmatprep.subr.mxu0 0.0
    %1135 = vmatpush1.msra.mxu0 0.0
    %1136 = vmatprep.subr.mxu0 0.0
    %1137 = vmatpush1.msra.mxu0 0.0
    %1138 = vmatprep.subr.mxu0 0.0
    %1139 = vmatpush1.msra.mxu0 0.0
    %1140 = vmatprep.subr.mxu0 0.0
    %1141 = vmatpush1.msra.mxu0 0.0
    %1142 = vmatprep.subr.mxu0 0.0
    %1143 = vmatpush1.msra.mxu0 0.0
    %1144 = vmatprep.subr.mxu0 0.0
    %1145 = vmatpush1.msra.mxu0 0.0
    %1146 = vmatprep.subr.mxu0 0.0
    %1147 = vmatpush1.msra.mxu0 0.0
    %1148 = vmatprep.subr.mxu0 0.0
    %1149 = vmatpush1.msra.mxu0 0.0
    %1150 = vmatprep.subr.mxu0 0.0
    %1151 = vmatpush1.msra.mxu0 0.0
    %1152 = vmatprep.subr.mxu0 0.0
    %1153 = vmatpush1.msra.mxu0 0.0
    %1154 = vmatprep.subr.mxu0 0.0
    %1155 = vmatpush1.msra.mxu0 0.0
    %1156 = vmatprep.subr.mxu0 0.0
    %1157 = vmatpush1.msra.mxu0 0.0
    %1158 = vmatprep.subr.mxu0 0.0
    %1159 = vmatpush1.msra.mxu0 0.0
    %1160 = vmatprep.subr.mxu0 0.0
    %1161 = vmatpush1.msra.mxu0 0.0
    %1162 = vmatprep.subr.mxu0 0.0
    %1163 = vmatpush1.msra.mxu0 0.0
    %1164 = vmatprep.subr.mxu0 0.0
    %1165 = vmatpush1.msra.mxu0 0.0
    %1166 = vmatprep.subr.mxu0 0.0
    %1167 = vmatpush1.msra.mxu0 0.0
    %1168 = vmatprep.subr.mxu0 0.0
    %1169 = vmatpush1.msra.mxu0 0.0
    %1170 = vmatprep.subr.mxu0 0.0
    %1171 = vmatpush1.msra.mxu0 0.0
    %1172 = vmatprep.subr.mxu0 0.0
    %1173 = vmatpush1.msra.mxu0 0.0
    %1174 = vmatprep.mubr.f32.mxu0 0.0
    %1175 = vmatmul.mubr.f32.gmra.mrb[0].mxu0 %v1108
    %v1176 = vpop.f32.mrb[0].mxu0
    %v1177 = vadd.f32 0.0, %v1176
    %v1178 = vpop.f32.mrb[0].mxu0
    %1179 = vdwg.mxu0
    %1180 = vrot.lane.b32.xlu0 %v211, 40
    %v1181 = vpop.permute.xlu0 %1180
    %v1184 = vsel %vm236, %v947, 0
    %1186 = vmatprep.subr.mxu0 0.0
    %1187 = vmatpush1.msra.mxu0 %v1181
    %1188 = vmatprep.subr.mxu0 0.0
    %1189 = vmatpush1.msra.mxu0 0.0
    %1190 = vmatprep.subr.mxu0 0.0
    %1191 = vmatpush1.msra.mxu0 0.0
    %1192 = vmatprep.subr.mxu0 0.0
    %1193 = vmatpush1.msra.mxu0 0.0
    %1194 = vmatprep.subr.mxu0 0.0
    %1195 = vmatpush1.msra.mxu0 0.0
    %1196 = vmatprep.subr.mxu0 0.0
    %1197 = vmatpush1.msra.mxu0 0.0
    %1198 = vmatprep.subr.mxu0 0.0
    %1199 = vmatpush1.msra.mxu0 0.0
    %1200 = vmatprep.subr.mxu0 0.0
    %1201 = vmatpush1.msra.mxu0 0.0
    %1202 = vmatprep.subr.mxu0 0.0
    %1203 = vmatpush1.msra.mxu0 0.0
    %1204 = vmatprep.subr.mxu0 0.0
    %1205 = vmatpush1.msra.mxu0 0.0
    %1206 = vmatprep.subr.mxu0 0.0
    %1207 = vmatpush1.msra.mxu0 0.0
    %1208 = vmatprep.subr.mxu0 0.0
    %1209 = vmatpush1.msra.mxu0 0.0
    %1210 = vmatprep.subr.mxu0 0.0
    %1211 = vmatpush1.msra.mxu0 0.0
    %1212 = vmatprep.subr.mxu0 0.0
    %1213 = vmatpush1.msra.mxu0 0.0
    %1214 = vmatprep.subr.mxu0 0.0
    %1215 = vmatpush1.msra.mxu0 0.0
    %1216 = vmatprep.subr.mxu0 0.0
    %1217 = vmatpush1.msra.mxu0 0.0
    %1218 = vmatprep.subr.mxu0 0.0
    %1219 = vmatpush1.msra.mxu0 0.0
    %1220 = vmatprep.subr.mxu0 0.0
    %1221 = vmatpush1.msra.mxu0 0.0
    %1222 = vmatprep.subr.mxu0 0.0
    %1223 = vmatpush1.msra.mxu0 0.0
    %1224 = vmatprep.subr.mxu0 0.0
    %1225 = vmatpush1.msra.mxu0 0.0
    %1226 = vmatprep.subr.mxu0 0.0
    %1227 = vmatpush1.msra.mxu0 0.0
    %1228 = vmatprep.subr.mxu0 0.0
    %1229 = vmatpush1.msra.mxu0 0.0
    %1230 = vmatprep.subr.mxu0 0.0
    %1231 = vmatpush1.msra.mxu0 0.0
    %1232 = vmatprep.subr.mxu0 0.0
    %1233 = vmatpush1.msra.mxu0 0.0
    %1234 = vmatprep.subr.mxu0 0.0
    %1235 = vmatpush1.msra.mxu0 0.0
    %1236 = vmatprep.subr.mxu0 0.0
    %1237 = vmatpush1.msra.mxu0 0.0
    %1238 = vmatprep.subr.mxu0 0.0
    %1239 = vmatpush1.msra.mxu0 0.0
    %1240 = vmatprep.subr.mxu0 0.0
    %1241 = vmatpush1.msra.mxu0 0.0
    %1242 = vmatprep.subr.mxu0 0.0
    %1243 = vmatpush1.msra.mxu0 0.0
    %1244 = vmatprep.subr.mxu0 0.0
    %1245 = vmatpush1.msra.mxu0 0.0
    %1246 = vmatprep.subr.mxu0 0.0
    %1247 = vmatpush1.msra.mxu0 0.0
    %1248 = vmatprep.subr.mxu0 0.0
    %1249 = vmatpush1.msra.mxu0 0.0
    %1250 = vmatprep.mubr.f32.mxu0 0.0
    %1251 = vmatmul.mubr.f32.gmra.mrb[0].mxu0 %v1184
    %v1252 = vpop.f32.mrb[0].mxu0
    %v1253 = vadd.f32 0.0, %v1252
    %v1254 = vpop.f32.mrb[0].mxu0
    %1255 = vdwg.mxu0
    %1257 = vrot.lane.b32.xlu0 %v1101, 8
    %v1258 = vpop.permute.xlu0 %1257
    %1261 = vrot.lane.b32.xlu0 %v1177, 16
    %v1262 = vpop.permute.xlu0 %1261
    %1265 = vrot.lane.b32.xlu0 %v1253, 24
    %v1266 = vpop.permute.xlu0 %1265
    %v1268 = vsel %vm236, %v1025, %v1258
    %vm1269 = vcmask 130048
    %v1270 = vsel %vm1269, %v1268, %v1262
    %vm1271 = vcmask 195584
    %v1272 = vsel %vm1271, %v1270, %v1266
    %1273 = vrot.lane.b32.xlu0 %v216, 64
    %v1274 = vpop.permute.xlu0 %1273
    %v1277 = vsel %vm236, %v948, 0
    %1279 = vmatprep.subr.mxu0 0.0
    %1280 = vmatpush1.msra.mxu0 %v1274
    %1281 = vmatprep.subr.mxu0 0.0
    %1282 = vmatpush1.msra.mxu0 0.0
    %1283 = vmatprep.subr.mxu0 0.0
    %1284 = vmatpush1.msra.mxu0 0.0
    %1285 = vmatprep.subr.mxu0 0.0
    %1286 = vmatpush1.msra.mxu0 0.0
    %1287 = vmatprep.subr.mxu0 0.0
    %1288 = vmatpush1.msra.mxu0 0.0
    %1289 = vmatprep.subr.mxu0 0.0
    %1290 = vmatpush1.msra.mxu0 0.0
    %1291 = vmatprep.subr.mxu0 0.0
    %1292 = vmatpush1.msra.mxu0 0.0
    %1293 = vmatprep.subr.mxu0 0.0
    %1294 = vmatpush1.msra.mxu0 0.0
    %1295 = vmatprep.subr.mxu0 0.0
    %1296 = vmatpush1.msra.mxu0 0.0
    %1297 = vmatprep.subr.mxu0 0.0
    %1298 = vmatpush1.msra.mxu0 0.0
    %1299 = vmatprep.subr.mxu0 0.0
    %1300 = vmatpush1.msra.mxu0 0.0
    %1301 = vmatprep.subr.mxu0 0.0
    %1302 = vmatpush1.msra.mxu0 0.0
    %1303 = vmatprep.subr.mxu0 0.0
    %1304 = vmatpush1.msra.mxu0 0.0
    %1305 = vmatprep.subr.mxu0 0.0
    %1306 = vmatpush1.msra.mxu0 0.0
    %1307 = vmatprep.subr.mxu0 0.0
    %1308 = vmatpush1.msra.mxu0 0.0
    %1309 = vmatprep.subr.mxu0 0.0
    %1310 = vmatpush1.msra.mxu0 0.0
    %1311 = vmatprep.subr.mxu0 0.0
    %1312 = vmatpush1.msra.mxu0 0.0
    %1313 = vmatprep.subr.mxu0 0.0
    %1314 = vmatpush1.msra.mxu0 0.0
    %1315 = vmatprep.subr.mxu0 0.0
    %1316 = vmatpush1.msra.mxu0 0.0
    %1317 = vmatprep.subr.mxu0 0.0
    %1318 = vmatpush1.msra.mxu0 0.0
    %1319 = vmatprep.subr.mxu0 0.0
    %1320 = vmatpush1.msra.mxu0 0.0
    %1321 = vmatprep.subr.mxu0 0.0
    %1322 = vmatpush1.msra.mxu0 0.0
    %1323 = vmatprep.subr.mxu0 0.0
    %1324 = vmatpush1.msra.mxu0 0.0
    %1325 = vmatprep.subr.mxu0 0.0
    %1326 = vmatpush1.msra.mxu0 0.0
    %1327 = vmatprep.subr.mxu0 0.0
    %1328 = vmatpush1.msra.mxu0 0.0
    %1329 = vmatprep.subr.mxu0 0.0
    %1330 = vmatpush1.msra.mxu0 0.0
    %1331 = vmatprep.subr.mxu0 0.0
    %1332 = vmatpush1.msra.mxu0 0.0
    %1333 = vmatprep.subr.mxu0 0.0
    %1334 = vmatpush1.msra.mxu0 0.0
    %1335 = vmatprep.subr.mxu0 0.0
    %1336 = vmatpush1.msra.mxu0 0.0
    %1337 = vmatprep.subr.mxu0 0.0
    %1338 = vmatpush1.msra.mxu0 0.0
    %1339 = vmatprep.subr.mxu0 0.0
    %1340 = vmatpush1.msra.mxu0 0.0
    %1341 = vmatprep.subr.mxu0 0.0
    %1342 = vmatpush1.msra.mxu0 0.0
    %1343 = vmatprep.mubr.f32.mxu0 0.0
    %1344 = vmatmul.mubr.f32.gmra.mrb[0].mxu0 %v1277
    %v1345 = vpop.f32.mrb[0].mxu0
    %v1346 = vadd.f32 0.0, %v1345
    %v1347 = vpop.f32.mrb[0].mxu0
    %1348 = vdwg.mxu0
    %1349 = vrot.lane.b32.xlu0 %v216, 56
    %v1350 = vpop.permute.xlu0 %1349
    %v1353 = vsel %vm236, %v949, 0
    %1355 = vmatprep.subr.mxu0 0.0
    %1356 = vmatpush1.msra.mxu0 %v1350
    %1357 = vmatprep.subr.mxu0 0.0
    %1358 = vmatpush1.msra.mxu0 0.0
    %1359 = vmatprep.subr.mxu0 0.0
    %1360 = vmatpush1.msra.mxu0 0.0
    %1361 = vmatprep.subr.mxu0 0.0
    %1362 = vmatpush1.msra.mxu0 0.0
    %1363 = vmatprep.subr.mxu0 0.0
    %1364 = vmatpush1.msra.mxu0 0.0
    %1365 = vmatprep.subr.mxu0 0.0
    %1366 = vmatpush1.msra.mxu0 0.0
    %1367 = vmatprep.subr.mxu0 0.0
    %1368 = vmatpush1.msra.mxu0 0.0
    %1369 = vmatprep.subr.mxu0 0.0
    %1370 = vmatpush1.msra.mxu0 0.0
    %1371 = vmatprep.subr.mxu0 0.0
    %1372 = vmatpush1.msra.mxu0 0.0
    %1373 = vmatprep.subr.mxu0 0.0
    %1374 = vmatpush1.msra.mxu0 0.0
    %1375 = vmatprep.subr.mxu0 0.0
    %1376 = vmatpush1.msra.mxu0 0.0
    %1377 = vmatprep.subr.mxu0 0.0
    %1378 = vmatpush1.msra.mxu0 0.0
    %1379 = vmatprep.subr.mxu0 0.0
    %1380 = vmatpush1.msra.mxu0 0.0
    %1381 = vmatprep.subr.mxu0 0.0
    %1382 = vmatpush1.msra.mxu0 0.0
    %1383 = vmatprep.subr.mxu0 0.0
    %1384 = vmatpush1.msra.mxu0 0.0
    %1385 = vmatprep.subr.mxu0 0.0
    %1386 = vmatpush1.msra.mxu0 0.0
    %1387 = vmatprep.subr.mxu0 0.0
    %1388 = vmatpush1.msra.mxu0 0.0
    %1389 = vmatprep.subr.mxu0 0.0
    %1390 = vmatpush1.msra.mxu0 0.0
    %1391 = vmatprep.subr.mxu0 0.0
    %1392 = vmatpush1.msra.mxu0 0.0
    %1393 = vmatprep.subr.mxu0 0.0
    %1394 = vmatpush1.msra.mxu0 0.0
    %1395 = vmatprep.subr.mxu0 0.0
    %1396 = vmatpush1.msra.mxu0 0.0
    %1397 = vmatprep.subr.mxu0 0.0
    %1398 = vmatpush1.msra.mxu0 0.0
    %1399 = vmatprep.subr.mxu0 0.0
    %1400 = vmatpush1.msra.mxu0 0.0
    %1401 = vmatprep.subr.mxu0 0.0
    %1402 = vmatpush1.msra.mxu0 0.0
    %1403 = vmatprep.subr.mxu0 0.0
    %1404 = vmatpush1.msra.mxu0 0.0
    %1405 = vmatprep.subr.mxu0 0.0
    %1406 = vmatpush1.msra.mxu0 0.0
    %1407 = vmatprep.subr.mxu0 0.0
    %1408 = vmatpush1.msra.mxu0 0.0
    %1409 = vmatprep.subr.mxu0 0.0
    %1410 = vmatpush1.msra.mxu0 0.0
    %1411 = vmatprep.subr.mxu0 0.0
    %1412 = vmatpush1.msra.mxu0 0.0
    %1413 = vmatprep.subr.mxu0 0.0
    %1414 = vmatpush1.msra.mxu0 0.0
    %1415 = vmatprep.subr.mxu0 0.0
    %1416 = vmatpush1.msra.mxu0 0.0
    %1417 = vmatprep.subr.mxu0 0.0
    %1418 = vmatpush1.msra.mxu0 0.0
    %1419 = vmatprep.mubr.f32.mxu0 0.0
    %1420 = vmatmul.mubr.f32.gmra.mrb[0].mxu0 %v1353
    %v1421 = vpop.f32.mrb[0].mxu0
    %v1422 = vadd.f32 0.0, %v1421
    %v1423 = vpop.f32.mrb[0].mxu0
    %1424 = vdwg.mxu0
    %1425 = vrot.lane.b32.xlu0 %v216, 48
    %v1426 = vpop.permute.xlu0 %1425
    %v1429 = vsel %vm236, %v950, 0
    %1431 = vmatprep.subr.mxu0 0.0
    %1432 = vmatpush1.msra.mxu0 %v1426
    %1433 = vmatprep.subr.mxu0 0.0
    %1434 = vmatpush1.msra.mxu0 0.0
    %1435 = vmatprep.subr.mxu0 0.0
    %1436 = vmatpush1.msra.mxu0 0.0
    %1437 = vmatprep.subr.mxu0 0.0
    %1438 = vmatpush1.msra.mxu0 0.0
    %1439 = vmatprep.subr.mxu0 0.0
    %1440 = vmatpush1.msra.mxu0 0.0
    %1441 = vmatprep.subr.mxu0 0.0
    %1442 = vmatpush1.msra.mxu0 0.0
    %1443 = vmatprep.subr.mxu0 0.0
    %1444 = vmatpush1.msra.mxu0 0.0
    %1445 = vmatprep.subr.mxu0 0.0
    %1446 = vmatpush1.msra.mxu0 0.0
    %1447 = vmatprep.subr.mxu0 0.0
    %1448 = vmatpush1.msra.mxu0 0.0
    %1449 = vmatprep.subr.mxu0 0.0
    %1450 = vmatpush1.msra.mxu0 0.0
    %1451 = vmatprep.subr.mxu0 0.0
    %1452 = vmatpush1.msra.mxu0 0.0
    %1453 = vmatprep.subr.mxu0 0.0
    %1454 = vmatpush1.msra.mxu0 0.0
    %1455 = vmatprep.subr.mxu0 0.0
    %1456 = vmatpush1.msra.mxu0 0.0
    %1457 = vmatprep.subr.mxu0 0.0
    %1458 = vmatpush1.msra.mxu0 0.0
    %1459 = vmatprep.subr.mxu0 0.0
    %1460 = vmatpush1.msra.mxu0 0.0
    %1461 = vmatprep.subr.mxu0 0.0
    %1462 = vmatpush1.msra.mxu0 0.0
    %1463 = vmatprep.subr.mxu0 0.0
    %1464 = vmatpush1.msra.mxu0 0.0
    %1465 = vmatprep.subr.mxu0 0.0
    %1466 = vmatpush1.msra.mxu0 0.0
    %1467 = vmatprep.subr.mxu0 0.0
    %1468 = vmatpush1.msra.mxu0 0.0
    %1469 = vmatprep.subr.mxu0 0.0
    %1470 = vmatpush1.msra.mxu0 0.0
    %1471 = vmatprep.subr.mxu0 0.0
    %1472 = vmatpush1.msra.mxu0 0.0
    %1473 = vmatprep.subr.mxu0 0.0
    %1474 = vmatpush1.msra.mxu0 0.0
    %1475 = vmatprep.subr.mxu0 0.0
    %1476 = vmatpush1.msra.mxu0 0.0
    %1477 = vmatprep.subr.mxu0 0.0
    %1478 = vmatpush1.msra.mxu0 0.0
    %1479 = vmatprep.subr.mxu0 0.0
    %1480 = vmatpush1.msra.mxu0 0.0
    %1481 = vmatprep.subr.mxu0 0.0
    %1482 = vmatpush1.msra.mxu0 0.0
    %1483 = vmatprep.subr.mxu0 0.0
    %1484 = vmatpush1.msra.mxu0 0.0
    %1485 = vmatprep.subr.mxu0 0.0
    %1486 = vmatpush1.msra.mxu0 0.0
    %1487 = vmatprep.subr.mxu0 0.0
    %1488 = vmatpush1.msra.mxu0 0.0
    %1489 = vmatprep.subr.mxu0 0.0
    %1490 = vmatpush1.msra.mxu0 0.0
    %1491 = vmatprep.subr.mxu0 0.0
    %1492 = vmatpush1.msra.mxu0 0.0
    %1493 = vmatprep.subr.mxu0 0.0
    %1494 = vmatpush1.msra.mxu0 0.0
    %1495 = vmatprep.mubr.f32.mxu0 0.0
    %1496 = vmatmul.mubr.f32.gmra.mrb[0].mxu0 %v1429
    %v1497 = vpop.f32.mrb[0].mxu0
    %v1498 = vadd.f32 0.0, %v1497
    %v1499 = vpop.f32.mrb[0].mxu0
    %1500 = vdwg.mxu0
    %1501 = vrot.lane.b32.xlu0 %v216, 40
    %v1502 = vpop.permute.xlu0 %1501
    %v1505 = vsel %vm236, %v951, 0
    %1507 = vmatprep.subr.mxu0 0.0
    %1508 = vmatpush1.msra.mxu0 %v1502
    %1509 = vmatprep.subr.mxu0 0.0
    %1510 = vmatpush1.msra.mxu0 0.0
    %1511 = vmatprep.subr.mxu0 0.0
    %1512 = vmatpush1.msra.mxu0 0.0
    %1513 = vmatprep.subr.mxu0 0.0
    %1514 = vmatpush1.msra.mxu0 0.0
    %1515 = vmatprep.subr.mxu0 0.0
    %1516 = vmatpush1.msra.mxu0 0.0
    %1517 = vmatprep.subr.mxu0 0.0
    %1518 = vmatpush1.msra.mxu0 0.0
    %1519 = vmatprep.subr.mxu0 0.0
    %1520 = vmatpush1.msra.mxu0 0.0
    %1521 = vmatprep.subr.mxu0 0.0
    %1522 = vmatpush1.msra.mxu0 0.0
    %1523 = vmatprep.subr.mxu0 0.0
    %1524 = vmatpush1.msra.mxu0 0.0
    %1525 = vmatprep.subr.mxu0 0.0
    %1526 = vmatpush1.msra.mxu0 0.0
    %1527 = vmatprep.subr.mxu0 0.0
    %1528 = vmatpush1.msra.mxu0 0.0
    %1529 = vmatprep.subr.mxu0 0.0
    %1530 = vmatpush1.msra.mxu0 0.0
    %1531 = vmatprep.subr.mxu0 0.0
    %1532 = vmatpush1.msra.mxu0 0.0
    %1533 = vmatprep.subr.mxu0 0.0
    %1534 = vmatpush1.msra.mxu0 0.0
    %1535 = vmatprep.subr.mxu0 0.0
    %1536 = vmatpush1.msra.mxu0 0.0
    %1537 = vmatprep.subr.mxu0 0.0
    %1538 = vmatpush1.msra.mxu0 0.0
    %1539 = vmatprep.subr.mxu0 0.0
    %1540 = vmatpush1.msra.mxu0 0.0
    %1541 = vmatprep.subr.mxu0 0.0
    %1542 = vmatpush1.msra.mxu0 0.0
    %1543 = vmatprep.subr.mxu0 0.0
    %1544 = vmatpush1.msra.mxu0 0.0
    %1545 = vmatprep.subr.mxu0 0.0
    %1546 = vmatpush1.msra.mxu0 0.0
    %1547 = vmatprep.subr.mxu0 0.0
    %1548 = vmatpush1.msra.mxu0 0.0
    %1549 = vmatprep.subr.mxu0 0.0
    %1550 = vmatpush1.msra.mxu0 0.0
    %1551 = vmatprep.subr.mxu0 0.0
    %1552 = vmatpush1.msra.mxu0 0.0
    %1553 = vmatprep.subr.mxu0 0.0
    %1554 = vmatpush1.msra.mxu0 0.0
    %1555 = vmatprep.subr.mxu0 0.0
    %1556 = vmatpush1.msra.mxu0 0.0
    %1557 = vmatprep.subr.mxu0 0.0
    %1558 = vmatpush1.msra.mxu0 0.0
    %1559 = vmatprep.subr.mxu0 0.0
    %1560 = vmatpush1.msra.mxu0 0.0
    %1561 = vmatprep.subr.mxu0 0.0
    %1562 = vmatpush1.msra.mxu0 0.0
    %1563 = vmatprep.subr.mxu0 0.0
    %1564 = vmatpush1.msra.mxu0 0.0
    %1565 = vmatprep.subr.mxu0 0.0
    %1566 = vmatpush1.msra.mxu0 0.0
    %1567 = vmatprep.subr.mxu0 0.0
    %1568 = vmatpush1.msra.mxu0 0.0
    %1569 = vmatprep.subr.mxu0 0.0
    %1570 = vmatpush1.msra.mxu0 0.0
    %1571 = vmatprep.mubr.f32.mxu0 0.0
    %1572 = vmatmul.mubr.f32.gmra.mrb[0].mxu0 %v1505
    %v1573 = vpop.f32.mrb[0].mxu0
    %v1574 = vadd.f32 0.0, %v1573
    %v1575 = vpop.f32.mrb[0].mxu0
    %1576 = vdwg.mxu0
    %1578 = vrot.lane.b32.xlu0 %v1422, 8
    %v1579 = vpop.permute.xlu0 %1578
    %1582 = vrot.lane.b32.xlu0 %v1498, 16
    %v1583 = vpop.permute.xlu0 %1582
    %1586 = vrot.lane.b32.xlu0 %v1574, 24
    %v1587 = vpop.permute.xlu0 %1586
    %v1589 = vsel %vm236, %v1346, %v1579
    %v1590 = vsel %vm1269, %v1589, %v1583
    %v1591 = vsel %vm1271, %v1590, %v1587
    %v1592 = vld [vmem:[%s6] sm:$0xff]
    %v1593 = vld [vmem:[%s6 + $0x8] sm:$0xff]
    %v1594 = vld [vmem:[%s6 + $0x10] sm:$0xff]
    %v1595 = vld [vmem:[%s6 + $0x18] sm:$0xff]
    %v1596 = vld [vmem:[#allocation5] sm:$0x1]
    %v1598 = vlaneseq
    %v1599 = vshrl.u32 %v1598, 7
    %v1600 = vsub.s32 0, %v1599
    %v1601 = vrot.slane %v1596, %v1600
    %v1604 = vsel %vm83, %v1272, 0
    %v1607 = vsel %vm83, %v1591, 0
    %1609 = vmatprep.subr.mxu0 0.0
    %1610 = vmatpush1.msra.mxu0 %v1592
    %1611 = vmatprep.subr.mxu0 0.0
    %1612 = vmatpush1.msra.mxu0 %v1593
    %1613 = vmatprep.subr.mxu0 0.0
    %1614 = vmatpush1.msra.mxu0 %v1594
    %1615 = vmatprep.subr.mxu0 0.0
    %1616 = vmatpush1.msra.mxu0 %v1595
    %1617 = vmatprep.subr.mxu0 0.0
    %1618 = vmatpush1.msra.mxu0 0.0
    %1619 = vmatprep.subr.mxu0 0.0
    %1620 = vmatpush1.msra.mxu0 0.0
    %1621 = vmatprep.subr.mxu0 0.0
    %1622 = vmatpush1.msra.mxu0 0.0
    %1623 = vmatprep.subr.mxu0 0.0
    %1624 = vmatpush1.msra.mxu0 0.0
    %1625 = vmatprep.subr.mxu0 0.0
    %1626 = vmatpush1.msra.mxu0 0.0
    %1627 = vmatprep.subr.mxu0 0.0
    %1628 = vmatpush1.msra.mxu0 0.0
    %1629 = vmatprep.subr.mxu0 0.0
    %1630 = vmatpush1.msra.mxu0 0.0
    %1631 = vmatprep.subr.mxu0 0.0
    %1632 = vmatpush1.msra.mxu0 0.0
    %1633 = vmatprep.subr.mxu0 0.0
    %1634 = vmatpush1.msra.mxu0 0.0
    %1635 = vmatprep.subr.mxu0 0.0
    %1636 = vmatpush1.msra.mxu0 0.0
    %1637 = vmatprep.subr.mxu0 0.0
    %1638 = vmatpush1.msra.mxu0 0.0
    %1639 = vmatprep.subr.mxu0 0.0
    %1640 = vmatpush1.msra.mxu0 0.0
    %1641 = vmatprep.subr.mxu0 0.0
    %1642 = vmatpush1.msra.mxu0 0.0
    %1643 = vmatprep.subr.mxu0 0.0
    %1644 = vmatpush1.msra.mxu0 0.0
    %1645 = vmatprep.subr.mxu0 0.0
    %1646 = vmatpush1.msra.mxu0 0.0
    %1647 = vmatprep.subr.mxu0 0.0
    %1648 = vmatpush1.msra.mxu0 0.0
    %1649 = vmatprep.subr.mxu0 0.0
    %1650 = vmatpush1.msra.mxu0 0.0
    %1651 = vmatprep.subr.mxu0 0.0
    %1652 = vmatpush1.msra.mxu0 0.0
    %1653 = vmatprep.subr.mxu0 0.0
    %1654 = vmatpush1.msra.mxu0 0.0
    %1655 = vmatprep.subr.mxu0 0.0
    %1656 = vmatpush1.msra.mxu0 0.0
    %1657 = vmatprep.subr.mxu0 0.0
    %1658 = vmatpush1.msra.mxu0 0.0
    %1659 = vmatprep.subr.mxu0 0.0
    %1660 = vmatpush1.msra.mxu0 0.0
    %1661 = vmatprep.subr.mxu0 0.0
    %1662 = vmatpush1.msra.mxu0 0.0
    %1663 = vmatprep.subr.mxu0 0.0
    %1664 = vmatpush1.msra.mxu0 0.0
    %1665 = vmatprep.subr.mxu0 0.0
    %1666 = vmatpush1.msra.mxu0 0.0
    %1667 = vmatprep.subr.mxu0 0.0
    %1668 = vmatpush1.msra.mxu0 0.0
    %1669 = vmatprep.subr.mxu0 0.0
    %1670 = vmatpush1.msra.mxu0 0.0
    %1671 = vmatprep.subr.mxu0 0.0
    %1672 = vmatpush1.msra.mxu0 0.0
    %1673 = vmatprep.mubr.f32.mxu0 0.0
    %1674 = vmatmul.mubr.f32.gmra.mrb[0].mxu0 %v1604
    %v1675 = vpop.f32.mrb[0].mxu0
    %v1676 = vadd.f32 %v1601, %v1675
    %v1677 = vpop.f32.mrb[0].mxu0
    %1678 = vmatprep.mubr.f32.mxu0 0.0
    %1679 = vmatmul.mubr.f32.gmra.mrb[0].mxu0 %v1607
    %v1680 = vpop.f32.mrb[0].mxu0
    %v1681 = vadd.f32 %v1601, %v1680
    %v1682 = vpop.f32.mrb[0].mxu0
    %1683 = vdwg.mxu0
    %v1684 = vadd.f32 %v79, %v1676
    %v1685 = vadd.f32 %v80, %v1681
    %v1686 = vsel %vm83, %v1684, 0.0
    %1687 = vadd.xlane.f32.xlu0 %v1686
    %v1688 = vpop.xlane.xlu0 %1687
    %v1689 = vsel %vm83, %v1685, 0.0
    %1690 = vadd.xlane.f32.xlu0 %v1689
    %v1691 = vpop.xlane.xlu0 %1690
    %v1692 = vmul.f32 %v1688, %v90
    %v1693 = vmul.f32 %v1691, %v90
    %v1694 = vsub.f32 %v1684, %v1692
    %v1695 = vsub.f32 %v1685, %v1693
    %v1696 = vmul.f32 %v1694, %v1694
    %v1697 = vmul.f32 %v1695, %v1695
    %v1698 = vsel %vm83, %v1696, 0.0
    %1699 = vadd.xlane.f32.xlu0 %v1698
    %v1700 = vpop.xlane.xlu0 %1699
    %v1701 = vsel %vm83, %v1697, 0.0
    %1702 = vadd.xlane.f32.xlu0 %v1701
    %v1703 = vpop.xlane.xlu0 %1702
    %v1704 = vmul.f32 %v1700, %v90
    %v1705 = vmul.f32 %v1703, %v90
    %v1706 = vadd.f32 %v1704, 1e-05
    %v1707 = vadd.f32 %v1705, 1e-05
    %v1708 = vrsqrt.pop %v1706
    %v1709 = vrsqrt.pop %v1707
    %v1710 = vmul.f32 %v1694, %v1708
    %v1711 = vmul.f32 %v1695, %v1709
    %v1712 = vmul.f32 %v1710, %v115
    %v1713 = vmul.f32 %v1711, %v115
    %v1714 = vadd.f32 %v1712, %v123
    %v1715 = vadd.f32 %v1713, %v123
    %v1716 = vld [vmem:[%s8] sm:$0xff]
    %v1717 = vld [vmem:[%s8 + $0x8] sm:$0xff]
    %v1718 = vld [vmem:[%s8 + $0x10] sm:$0xff]
    %v1719 = vld [vmem:[%s8 + $0x18] sm:$0xff]
    %v1720 = vld [vmem:[#allocation7] sm:$0x1]
    %v1722 = vlaneseq
    %v1723 = vshrl.u32 %v1722, 7
    %v1724 = vsub.s32 0, %v1723
    %v1725 = vrot.slane %v1720, %v1724
    %v1728 = vsel %vm83, %v1714, 0
    %v1731 = vsel %vm83, %v1715, 0
    %1733 = vmatprep.subr.mxu0 0.0
    %1734 = vmatpush1.msra.mxu0 %v1716
    %1735 = vmatprep.subr.mxu0 0.0
    %1736 = vmatpush1.msra.mxu0 %v1717
    %1737 = vmatprep.subr.mxu0 0.0
    %1738 = vmatpush1.msra.mxu0 %v1718
    %1739 = vmatprep.subr.mxu0 0.0
    %1740 = vmatpush1.msra.mxu0 %v1719
    %1741 = vmatprep.subr.mxu0 0.0
    %1742 = vmatpush1.msra.mxu0 0.0
    %1743 = vmatprep.subr.mxu0 0.0
    %1744 = vmatpush1.msra.mxu0 0.0
    %1745 = vmatprep.subr.mxu0 0.0
    %1746 = vmatpush1.msra.mxu0 0.0
    %1747 = vmatprep.subr.mxu0 0.0
    %1748 = vmatpush1.msra.mxu0 0.0
    %1749 = vmatprep.subr.mxu0 0.0
    %1750 = vmatpush1.msra.mxu0 0.0
    %1751 = vmatprep.subr.mxu0 0.0
    %1752 = vmatpush1.msra.mxu0 0.0
    %1753 = vmatprep.subr.mxu0 0.0
    %1754 = vmatpush1.msra.mxu0 0.0
    %1755 = vmatprep.subr.mxu0 0.0
    %1756 = vmatpush1.msra.mxu0 0.0
    %1757 = vmatprep.subr.mxu0 0.0
    %1758 = vmatpush1.msra.mxu0 0.0
    %1759 = vmatprep.subr.mxu0 0.0
    %1760 = vmatpush1.msra.mxu0 0.0
    %1761 = vmatprep.subr.mxu0 0.0
    %1762 = vmatpush1.msra.mxu0 0.0
    %1763 = vmatprep.subr.mxu0 0.0
    %1764 = vmatpush1.msra.mxu0 0.0
    %1765 = vmatprep.subr.mxu0 0.0
    %1766 = vmatpush1.msra.mxu0 0.0
    %1767 = vmatprep.subr.mxu0 0.0
    %1768 = vmatpush1.msra.mxu0 0.0
    %1769 = vmatprep.subr.mxu0 0.0
    %1770 = vmatpush1.msra.mxu0 0.0
    %1771 = vmatprep.subr.mxu0 0.0
    %1772 = vmatpush1.msra.mxu0 0.0
    %1773 = vmatprep.subr.mxu0 0.0
    %1774 = vmatpush1.msra.mxu0 0.0
    %1775 = vmatprep.subr.mxu0 0.0
    %1776 = vmatpush1.msra.mxu0 0.0
    %1777 = vmatprep.subr.mxu0 0.0
    %1778 = vmatpush1.msra.mxu0 0.0
    %1779 = vmatprep.subr.mxu0 0.0
    %1780 = vmatpush1.msra.mxu0 0.0
    %1781 = vmatprep.subr.mxu0 0.0
    %1782 = vmatpush1.msra.mxu0 0.0
    %1783 = vmatprep.subr.mxu0 0.0
    %1784 = vmatpush1.msra.mxu0 0.0
    %1785 = vmatprep.subr.mxu0 0.0
    %1786 = vmatpush1.msra.mxu0 0.0
    %1787 = vmatprep.subr.mxu0 0.0
    %1788 = vmatpush1.msra.mxu0 0.0
    %1789 = vmatprep.subr.mxu0 0.0
    %1790 = vmatpush1.msra.mxu0 0.0
    %1791 = vmatprep.subr.mxu0 0.0
    %1792 = vmatpush1.msra.mxu0 0.0
    %1793 = vmatprep.subr.mxu0 0.0
    %1794 = vmatpush1.msra.mxu0 0.0
    %1795 = vmatprep.subr.mxu0 0.0
    %1796 = vmatpush1.msra.mxu0 0.0
    %1797 = vmatprep.mubr.f32.mxu0 0.0
    %1798 = vmatmul.mubr.f32.gmra.mrb[0].mxu0 %v1728
    %v1799 = vpop.f32.mrb[0].mxu0
    %v1800 = vadd.f32 %v1725, %v1799
    %v1801 = vpop.f32.mrb[0].mxu0
    %1802 = vmatprep.mubr.f32.mxu0 0.0
    %1803 = vmatmul.mubr.f32.gmra.mrb[0].mxu0 %v1731
    %v1804 = vpop.f32.mrb[0].mxu0
    %v1805 = vadd.f32 %v1725, %v1804
    %v1806 = vpop.f32.mrb[0].mxu0
    %1807 = vdwg.mxu0
    %v1808 = vmax.f32 %v1800, 0.0
    %v1809 = vmax.f32 %v1805, 0.0
    %v1810 = vld [vmem:[%s10] sm:$0xff]
    %v1811 = vld [vmem:[%s10 + $0x8] sm:$0xff]
    %v1812 = vld [vmem:[%s10 + $0x10] sm:$0xff]
    %v1813 = vld [vmem:[%s10 + $0x18] sm:$0xff]
    %v1814 = vld [vmem:[%s10 + $0x20] sm:$0xff]
    %v1815 = vld [vmem:[%s10 + $0x28] sm:$0xff]
    %v1816 = vld [vmem:[%s10 + $0x30] sm:$0xff]
    %v1817 = vld [vmem:[%s10 + $0x38] sm:$0xff]
    %v1818 = vld [vmem:[%s11] sm:$0x1]
    %v1820 = vlaneseq
    %v1821 = vshrl.u32 %v1820, 7
    %v1822 = vsub.s32 0, %v1821
    %v1823 = vrot.slane %v1818, %v1822
    %vm1825 = vcmask 523264
    %v1827 = vsel %vm1825, %v1808, 0
    %v1830 = vsel %vm1825, %v1809, 0
    %1832 = vmatprep.subr.mxu0 0.0
    %1833 = vmatpush1.msra.mxu0 %v1810
    %1834 = vmatprep.subr.mxu0 0.0
    %1835 = vmatpush1.msra.mxu0 %v1811
    %1836 = vmatprep.subr.mxu0 0.0
    %1837 = vmatpush1.msra.mxu0 %v1812
    %1838 = vmatprep.subr.mxu0 0.0
    %1839 = vmatpush1.msra.mxu0 %v1813
    %1840 = vmatprep.subr.mxu0 0.0
    %1841 = vmatpush1.msra.mxu0 %v1814
    %1842 = vmatprep.subr.mxu0 0.0
    %1843 = vmatpush1.msra.mxu0 %v1815
    %1844 = vmatprep.subr.mxu0 0.0
    %1845 = vmatpush1.msra.mxu0 %v1816
    %1846 = vmatprep.subr.mxu0 0.0
    %1847 = vmatpush1.msra.mxu0 %v1817
    %1848 = vmatprep.subr.mxu0 0.0
    %1849 = vmatpush1.msra.mxu0 0.0
    %1850 = vmatprep.subr.mxu0 0.0
    %1851 = vmatpush1.msra.mxu0 0.0
    %1852 = vmatprep.subr.mxu0 0.0
    %1853 = vmatpush1.msra.mxu0 0.0
    %1854 = vmatprep.subr.mxu0 0.0
    %1855 = vmatpush1.msra.mxu0 0.0
    %1856 = vmatprep.subr.mxu0 0.0
    %1857 = vmatpush1.msra.mxu0 0.0
    %1858 = vmatprep.subr.mxu0 0.0
    %1859 = vmatpush1.msra.mxu0 0.0
    %1860 = vmatprep.subr.mxu0 0.0
    %1861 = vmatpush1.msra.mxu0 0.0
    %1862 = vmatprep.subr.mxu0 0.0
    %1863 = vmatpush1.msra.mxu0 0.0
    %1864 = vmatprep.subr.mxu0 0.0
    %1865 = vmatpush1.msra.mxu0 0.0
    %1866 = vmatprep.subr.mxu0 0.0
    %1867 = vmatpush1.msra.mxu0 0.0
    %1868 = vmatprep.subr.mxu0 0.0
    %1869 = vmatpush1.msra.mxu0 0.0
    %1870 = vmatprep.subr.mxu0 0.0
    %1871 = vmatpush1.msra.mxu0 0.0
    %1872 = vmatprep.subr.mxu0 0.0
    %1873 = vmatpush1.msra.mxu0 0.0
    %1874 = vmatprep.subr.mxu0 0.0
    %1875 = vmatpush1.msra.mxu0 0.0
    %1876 = vmatprep.subr.mxu0 0.0
    %1877 = vmatpush1.msra.mxu0 0.0
    %1878 = vmatprep.subr.mxu0 0.0
    %1879 = vmatpush1.msra.mxu0 0.0
    %1880 = vmatprep.subr.mxu0 0.0
    %1881 = vmatpush1.msra.mxu0 0.0
    %1882 = vmatprep.subr.mxu0 0.0
    %1883 = vmatpush1.msra.mxu0 0.0
    %1884 = vmatprep.subr.mxu0 0.0
    %1885 = vmatpush1.msra.mxu0 0.0
    %1886 = vmatprep.subr.mxu0 0.0
    %1887 = vmatpush1.msra.mxu0 0.0
    %1888 = vmatprep.subr.mxu0 0.0
    %1889 = vmatpush1.msra.mxu0 0.0
    %1890 = vmatprep.subr.mxu0 0.0
    %1891 = vmatpush1.msra.mxu0 0.0
    %1892 = vmatprep.subr.mxu0 0.0
    %1893 = vmatpush1.msra.mxu0 0.0
    %1894 = vmatprep.subr.mxu0 0.0
    %1895 = vmatpush1.msra.mxu0 0.0
    %1896 = vmatprep.mubr.f32.mxu0 0.0
    %1897 = vmatmul.mubr.f32.gmra.mrb[0].mxu0 %v1827
    %v1898 = vpop.f32.mrb[0].mxu0
    %v1899 = vadd.f32 %v1823, %v1898
    %v1900 = vpop.f32.mrb[0].mxu0
    %1901 = vmatprep.mubr.f32.mxu0 0.0
    %1902 = vmatmul.mubr.f32.gmra.mrb[0].mxu0 %v1830
    %v1903 = vpop.f32.mrb[0].mxu0
    %v1904 = vadd.f32 %v1823, %v1903
    %v1905 = vpop.f32.mrb[0].mxu0
    %1906 = vdwg.mxu0
    %v1907 = vadd.f32 %v1684, %v1899
    %v1908 = vadd.f32 %v1685, %v1904
    %1909 = vst.msk [vmem:[#allocation8] sm:$0xff] %vm83, %v1907
    %1910 = vst.msk [vmem:[#allocation8 + $0x8] sm:$0xff] %vm83, %v1908
    // Predicated region
    $region62: #{tpu_custom_call.1} parent=1 // pred_check
      _
    $region63: #{tpu_custom_call.1} parent=1 // pred_check_branch
      %1912 = sbr.rel (0) target = $region65
    $region64: #{tpu_custom_call.1} parent=1 // pred_region
      %s1914 = ssub.s32 256, 256
      %1915 = vsyncadd [#allocation4], %s1914
      %s1916 = sshll.u32 [#allocation8], 4
      %s1917 = int_to_ptr.vmem [resolvable:$true] %s1916
      %1922 = dma.vmem_to_hbm [thread:$0]  %s1917, 256, %s12, [#allocation4], 128, 128, 8
    $region65: #{tpu_custom_call.1} parent=1 // pred_fallthru
      _
    // Predicated region
    $region66: #{tpu_custom_call.1} parent=1 // pred_check
      _
    $region67: #{tpu_custom_call.1} parent=1 // pred_check_branch
      %1924 = sbr.rel (0) target = $region69
    $region68: #{tpu_custom_call.1} parent=1 // pred_region
      %1925 = dma.done [#allocation4], 256
    $region69: #{tpu_custom_call.1} parent=1 // pred_fallthru
      _
    %1926 = vsyncpa [#allocation3], 1
    %1927 = vsyncpa [#allocation6], 1
    %1928 = vsyncpa [#allocation4], 1

</llo_original>
